<compile_context>
chip_gen: v6e
topology: v6e:2x2x1
jax: 0.10.0
libtpu: 0.0.40
codegen_flags: <defaults>
</compile_context>

<pallas_src>
import math
from functools import partial

import numpy as np
import jax
import jax.numpy as jnp
from jax.experimental import pallas as pl
from jax.experimental.pallas import tpu as pltpu


def get_padding(kernel_size, dilation=1):
    return int((kernel_size * dilation - dilation) / 2)


_DENSE_ACC_ELEMS = 256 * 256      # f32 MXU-path accumulator cap (256 KiB scratch)
_GROUPED_ACC_ELEMS = 16 * 1024    # f32 VPU-path accumulator cap (64 KiB in vregs)


def _round_up(x, m):
    return ((x + m - 1) // m) * m


def _pick_tile(l_out, cout, acc_elems):
    """Output-length tile: multiple of 16 (bf16 sublane packing), capped so the
    f32 accumulator stays <= acc_elems; never a single full-length monster tile."""
    cap = max(16, min(512, (acc_elems // max(cout, 1) // 16) * 16))
    if l_out <= 16:
        return l_out                      # full-dim block (always legal)
    if l_out <= cap:
        return _round_up(l_out, 16)
    return cap


def _vmem_limit(*byte_counts):
    """Request enough VMEM for double-buffered blocks, clamped to ~3/4 of the
    running generation's physical VMEM (v5e/v6e 128 MiB, v7x 64 MiB)."""
    try:
        phys = int(pltpu.get_tpu_info().vmem_capacity_bytes)
    except Exception:
        phys = 128 << 20
    budget = (phys * 3) // 4
    need = 2 * sum(int(b) for b in byte_counts) + (16 << 20)
    return int(max(24 << 20, min(need, budget)))


# --------------------------------------------------------------------------
# Kernel 1: dense MXU conv (stride folded, taps as accumulated matmuls)
# --------------------------------------------------------------------------
def _make_dense_kernel(qk, D, tl, cout, apply_act, neg_slope, want_fused):
    def kernel(xr_ref, w_ref, b_ref, *rest):
        # xr_ref: (M, D)        polyphase NLC input (D = stride*cin), resident per b
        # w_ref : (qk*D, cout)  bf16; rows q*D + d hold tap q of channel d
        # b_ref : (1, cout)     f32
        # o_ref : (tl, cout)    next-layer activation (bf16 or f32)
        # f_ref : (cout, tl)    optional f32 fmap tile (PyTorch NCL layout)
        # acc   : (tl, cout)    f32 VMEM scratch accumulator
        if want_fused:
            o_ref, f_ref, acc_ref = rest
        else:
            o_ref, acc_ref = rest
            f_ref = None
        lt = pl.program_id(1)
        base = lt * tl
        if tl % 8 == 0:
            base = pl.multiple_of(base, tl)
        for q in range(qk):
            xq = xr_ref[pl.ds(base + q, tl), :].astype(jnp.bfloat16)   # (tl, D)
            wq = w_ref[q * D:(q + 1) * D, :]                           # (D, cout)
            contrib = jnp.dot(xq, wq, preferred_element_type=jnp.float32)
            if q == 0:
                acc_ref[...] = contrib
            else:
                acc_ref[...] += contrib
        acc = acc_ref[...] + b_ref[...]
        if apply_act:
            acc = jnp.where(acc >= 0.0, acc, neg_slope * acc)          # LeakyReLU
        o_ref[...] = acc.astype(o_ref.dtype)
        if want_fused:
            f_ref[...] = jnp.transpose(acc, (1, 0))
    return kernel


@partial(jax.jit, static_argnames=("K", "stride", "padding", "apply_act",
                                   "neg_slope", "out_dtype", "want_fmap"))
def dense_conv1d(x, w_p, bias, *, K, stride, padding, apply_act,
                 neg_slope=0.1, out_dtype=jnp.float32, want_fmap=False):
    """Dense (or block-diagonal-expanded grouped) Conv1d on NLC activations."""
    B, L, cin = x.shape
    cout = w_p.shape[1]
    s = stride
    l_pad = L + 2 * padding
    l_out = (l_pad - K) // s + 1
    qk = (K - 1) // s + 1
    D = s * cin
    assert w_p.shape[0] == qk * D, (w_p.shape, qk, D)

    tl = _pick_tile(l_out, cout, _DENSE_ACC_ELEMS)
    n_lt = -(-l_out // tl)
    Lp = n_lt * tl
    M = Lp + qk - 1
    total = M * s

    xpad = jnp.pad(x, ((0, 0), (padding, padding + max(0, total - l_pad)), (0, 0)))
    if total < l_pad:
        xpad = xpad[:, :total, :]          # tail samples never referenced
    xr = xpad.reshape(B, M, D)             # free polyphase reshape (row-major)

    want_fused = want_fmap and cout % 128 == 0 and tl % 128 == 0
    kernel = _make_dense_kernel(qk, D, tl, cout, apply_act, neg_slope, want_fused)

    vmem = _vmem_limit(M * D * xr.dtype.itemsize,
                       qk * D * cout * 2,
                       cout * 4,
                       tl * cout * jnp.dtype(out_dtype).itemsize,
                       (tl * cout * 4) if want_fused else 0,
                       tl * cout * 4,
                       tl * D * 4)

    out_shape = [jax.ShapeDtypeStruct((B, Lp, cout), out_dtype)]
    out_specs = [pl.BlockSpec((None, tl, cout), lambda b, lt: (b, lt, 0))]
    if want_fused:
        out_shape.append(jax.ShapeDtypeStruct((B, cout, Lp), jnp.float32))
        out_specs.append(pl.BlockSpec((None, cout, tl), lambda b, lt: (b, 0, lt)))

    res = pl.pallas_call(
        kernel,
        out_shape=tuple(out_shape),
        grid_spec=pltpu.PrefetchScalarGridSpec(
            num_scalar_prefetch=0,
            grid=(B, n_lt),
            in_specs=[
                # Input resident per batch element across the L-tile axis.
                # TODO(synk): halo-windowed manual DMA of tl+qk-1 rows for very
                # long sequences so the resident block becomes O(tile) not O(L).
                pl.BlockSpec((None, M, D), lambda b, lt: (b, 0, 0)),
                pl.BlockSpec((qk * D, cout), lambda b, lt: (0, 0)),
                pl.BlockSpec((1, cout), lambda b, lt: (0, 0)),
            ],
            out_specs=out_specs,
            scratch_shapes=[pltpu.VMEM((tl, cout), jnp.float32)],
        ),
        compiler_params=pltpu.CompilerParams(
            dimension_semantics=("parallel", "parallel"),
            vmem_limit_bytes=vmem,
        ),
    )(xr, w_p, bias.reshape(1, cout))

    y = res[0]
    if Lp > l_out:
        y = y[:, :l_out, :]
    fmap = None
    if want_fused:
        fmap = res[1]
        if Lp > l_out:
            fmap = fmap[:, :, :l_out]
    return y, fmap


# --------------------------------------------------------------------------
# Kernel 2: grouped / depthwise conv (per-tap VPU MAC, one slab load per phase)
# --------------------------------------------------------------------------
def _make_grouped_kernel(K, cin_g, stride, tl, cout, neg_slope, want_fused):
    qk = (K - 1) // stride + 1

    def kernel(xp_ref, w_ref, b_ref, *rest):
        # xp_ref: (cin_g*stride, M, cout)  channel-gathered polyphase input
        # w_ref : (K*cin_g, cout)          w[k*cin_g + i, o] = torch_w[o, i, k]
        # b_ref : (1, cout)
        if want_fused:
            o_ref, f_ref = rest
        else:
            (o_ref,) = rest
            f_ref = None
        lt = pl.program_id(1)
        base = lt * tl
        if tl % 8 == 0:
            base = pl.multiple_of(base, tl)
        acc = jnp.zeros((tl, cout), jnp.float32)
        for i in range(cin_g):
            for r in range(stride):
                # ONE slab load per (i, r) input phase; per-tap shifted views
                # are cheap in-register sublane slices of this slab.
                slab = xp_ref[i * stride + r, pl.ds(base, tl + qk - 1), :]
                slab = slab.astype(jnp.float32)
                for q in range(qk):
                    k = q * stride + r
                    if k >= K:
                        continue
                    wk = w_ref[pl.ds(k * cin_g + i, 1), :]        # (1, cout)
                    acc = acc + slab[q:q + tl, :] * wk
        acc = acc + b_ref[...]
        acc = jnp.where(acc >= 0.0, acc, neg_slope * acc)          # LeakyReLU
        o_ref[...] = acc.astype(o_ref.dtype)
        if want_fused:
            f_ref[...] = jnp.transpose(acc, (1, 0))
    return kernel


@partial(jax.jit, static_argnames=("K", "stride", "padding", "groups",
                                   "neg_slope", "out_dtype", "want_fmap"))
def grouped_conv1d(x, w_g, bias, *, K, stride, padding, groups, neg_slope=0.1,
                   out_dtype=jnp.float32, want_fmap=False):
    """Grouped Conv1d + LeakyReLU on NLC activations (no dense weight expansion)."""
    B, L, cin = x.shape
    cout = w_g.shape[1]
    cin_g = cin // groups
    cout_g = cout // groups
    l_pad = L + 2 * padding
    l_out = (l_pad - K) // stride + 1
    qk = (K - 1) // stride + 1
    tl = _pick_tile(l_out, cout, _GROUPED_ACC_ELEMS)
    n_lt = -(-l_out // tl)
    Lp = n_lt * tl
    M = Lp + qk - 1
    total = M * stride

    # Channel gather + repeat: slice i, output lane o reads input channel
    # (o // cout_g) * cin_g + i, so the kernel is a pure per-tap VPU MAC.
    # Only the (near-)depthwise g=64/g=256 layers and the cin=1 first block use
    # this path, so the cout_g-fold expansion stays small (bf16 activations).
    # TODO(synk): do the lane expansion in-kernel for large C configurations.
    xr = jnp.stack(
        [jnp.repeat(x[:, :, i::cin_g], cout_g, axis=2) for i in range(cin_g)],
        axis=1)                                            # (B, cin_g, L, cout)
    xr = jnp.pad(xr, ((0, 0), (0, 0),
                      (padding, padding + max(0, total - l_pad)), (0, 0)))
    if total < l_pad:
        xr = xr[:, :, :total, :]                           # tail never referenced
    xr = (xr.reshape(B, cin_g, M, stride, cout)
            .transpose(0, 1, 3, 2, 4)
            .reshape(B, cin_g * stride, M, cout))

    want_fused = want_fmap and cout % 128 == 0 and tl % 128 == 0
    kernel = _make_grouped_kernel(K, cin_g, stride, tl, cout, neg_slope, want_fused)

    vmem = _vmem_limit(cin_g * stride * M * cout * xr.dtype.itemsize,
                       K * cin_g * cout * 4,
                       cout * 4,
                       tl * cout * jnp.dtype(out_dtype).itemsize,
                       (tl * cout * 4) if want_fused else 0,
                       (tl + qk) * cout * 4)

    out_shape = [jax.ShapeDtypeStruct((B, Lp, cout), out_dtype)]
    out_specs = [pl.BlockSpec((None, tl, cout), lambda b, lt: (b, lt, 0))]
    if want_fused:
        out_shape.append(jax.ShapeDtypeStruct((B, cout, Lp), jnp.float32))
        out_specs.append(pl.BlockSpec((None, cout, tl), lambda b, lt: (b, 0, lt)))

    res = pl.pallas_call(
        kernel,
        out_shape=tuple(out_shape),
        grid_spec=pltpu.PrefetchScalarGridSpec(
            num_scalar_prefetch=0,
            grid=(B, n_lt),
            in_specs=[
                pl.BlockSpec((None, cin_g * stride, M, cout),
                             lambda b, lt: (b, 0, 0, 0)),      # resident over lt
                pl.BlockSpec((K * cin_g, cout), lambda b, lt: (0, 0)),
                pl.BlockSpec((1, cout), lambda b, lt: (0, 0)),
            ],
            out_specs=out_specs,
        ),
        compiler_params=pltpu.CompilerParams(
            dimension_semantics=("parallel", "parallel"),
            vmem_limit_bytes=vmem,
        ),
    )(xr, w_g, bias.reshape(1, cout))

    y = res[0]
    if Lp > l_out:
        y = y[:, :l_out, :]
    fmap = None
    if want_fused:
        fmap = res[1]
        if Lp > l_out:
            fmap = fmap[:, :, :l_out]
    return y, fmap


# --------------------------------------------------------------------------
# PQMF analysis, subband 0 only (bf16 window slab + one MXU matmul)
# --------------------------------------------------------------------------
def _design_prototype_filter(taps, cutoff, beta):
    # TODO(synk): numpy approximation of scipy.signal.firwin(taps+1, cutoff,
    # window=("kaiser", beta)) -- deterministic, coefficients differ slightly.
    n = np.arange(taps + 1, dtype=np.float64)
    m = n - taps / 2.0
    h = cutoff * np.sinc(cutoff * m)
    h = h * np.kaiser(taps + 1, beta)
    return h / np.sum(h)


def _pqmf_band0_filter(subbands, taps, cutoff, beta):
    h = _design_prototype_filter(taps, cutoff, beta)
    n = np.arange(taps + 1, dtype=np.float64)
    h0 = 2.0 * h * np.cos((np.pi / (2.0 * subbands)) * (n - taps / 2.0) + np.pi / 4.0)
    return np.asarray(h0, np.float32)


@partial(jax.jit, static_argnames=("subbands", "taps", "cutoff", "beta"))
def pqmf_first_band(x, *, subbands, taps, cutoff, beta):
    """PQMF analysis restricted to subband 0 (the only one the module keeps)."""
    B, N = x.shape
    K = taps + 1
    s = subbands
    p = taps // 2
    l_pad = N + 2 * p
    l_out = (l_pad - K) // s + 1
    qk = (K - 1) // s + 1
    D = qk * s
    M = l_out + qk - 1
    total = M * s

    xpad = jnp.pad(x, ((0, 0), (p, p + max(0, total - l_pad))))
    if total < l_pad:
        xpad = xpad[:, :total]
    xr = xpad.reshape(B, M, s).astype(jnp.bfloat16)   # free polyphase reshape
    windows = jnp.concatenate([xr[:, q:q + l_out, :] for q in range(qk)],
                              axis=-1)                # (B, l_out, qk*s), bf16

    h0 = _pqmf_band0_filter(subbands, taps, cutoff, beta)
    w = np.zeros((D, 1), np.float32)
    w[:K, 0] = h0                                     # tail columns weight 0
    w = jnp.asarray(w, jnp.bfloat16)
    bias = jnp.zeros((1,), jnp.float32)
    y, _ = dense_conv1d(windows, w, bias, K=1, stride=1, padding=0,
                        apply_act=False, out_dtype=jnp.bfloat16, want_fmap=False)
    return y                                          # (B, l_out, 1) bf16


# --------------------------------------------------------------------------
# Parameters (deterministic PyTorch-Conv1d-style uniform init, packed layouts)
# --------------------------------------------------------------------------
def init_conv(key, cin, cout, k, groups):
    cin_g = cin // groups
    bound = 1.0 / math.sqrt(cin_g * k)
    kw, kb = jax.random.split(key)
    w = jax.random.uniform(kw, (cout, cin_g, k), jnp.float32, -bound, bound)
    b = jax.random.uniform(kb, (cout,), jnp.float32, -bound, bound)
    return w, b


def _pack_grouped(w):
    # torch (cout, cin_g, K) -> (K*cin_g, cout), row index k*cin_g + i
    cout, cin_g, k = w.shape
    return jnp.transpose(w, (2, 1, 0)).reshape(k * cin_g, cout)


def _expand_group_weight(w, groups):
    # torch grouped (cout, cin_g, K) -> dense block-diagonal (cout, cin, K)
    cout, cin_g, K = w.shape
    cout_g = cout // groups
    cin = cin_g * groups
    wd = jnp.zeros((cout, cin, K), w.dtype)
    for g in range(groups):
        wd = wd.at[g * cout_g:(g + 1) * cout_g,
                   g * cin_g:(g + 1) * cin_g, :].set(w[g * cout_g:(g + 1) * cout_g])
    return wd


def _pack_dense_strided(w_dense, stride):
    # torch dense (cout, cin, K) -> (qk*stride*cin, cout) bf16; row index
    # q*(stride*cin) + r*cin + c holds tap k = q*stride + r (zero if k >= K).
    cout, cin, K = w_dense.shape
    qk = (K - 1) // stride + 1
    wfull = jnp.zeros((cout, cin, qk * stride), w_dense.dtype)
    wfull = wfull.at[:, :, :K].set(w_dense)
    wfull = wfull.reshape(cout, cin, qk, stride)
    wp = jnp.transpose(wfull, (2, 3, 1, 0)).reshape(qk * stride * cin, cout)
    return wp.astype(jnp.bfloat16)


def _use_dense_path(cin, groups, stride):
    if groups == 1:
        return cin >= 8            # the cin=1 first block stays on the VPU path
    # Block-diagonal MXU routing for modest group counts with a usable lane
    # width; g=64 / g=256 (near-)depthwise layers stay on the VPU MAC path.
    return groups <= 16 and stride * cin >= 32


def build_combd_params(key, channels, kernels, groups, strides):
    layers = []
    cin = 1
    for f, k, g, s in zip(channels, kernels, groups, strides):
        key, sub = jax.random.split(key)
        w, b = init_conv(sub, cin, f, k, g)
        p = get_padding(k, 1)
        if _use_dense_path(cin, g, s):
            wd = _expand_group_weight(w, g) if g > 1 else w
            layers.append(dict(kind="dense", w=_pack_dense_strided(wd, s), b=b,
                               k=k, s=s, p=p))
        else:
            layers.append(dict(kind="grouped", w=_pack_grouped(w), b=b, k=k,
                               s=s, g=g, p=p))
        cin = f
    key, sub = jax.random.split(key)
    w, b = init_conv(sub, channels[-1], 1, 3, 1)
    layers.append(dict(kind="dense", w=_pack_dense_strided(w, 1), b=b, k=3, s=1,
                       p=get_padding(3, 1)))
    return layers


def build_multi_combd_params(key, C):
    kernels = [[7, 11, 11, 11, 11, 5],
               [11, 21, 21, 21, 21, 5],
               [15, 41, 41, 41, 41, 5]]
    channels = [C, 4 * C, 16 * C, 64 * C, 64 * C, 64 * C]
    groups = [1, 4, 16, 64, 256, 1]
    strides = [1, 1, 4, 4, 4, 1]
    combds = []
    for ks in kernels:
        key, sub = jax.random.split(key)
        combds.append(build_combd_params(sub, channels, ks, groups, strides))
    return {"combds": combds}


# --------------------------------------------------------------------------
# CoMBD / MultiCoMBD forward
# --------------------------------------------------------------------------
def combd_forward(x_nlc, layers, negative_slope=0.1):
    fmaps = []
    h = x_nlc
    for lyr in layers[:-1]:
        if lyr["kind"] == "grouped":
            h, fm = grouped_conv1d(h, lyr["w"], lyr["b"], K=lyr["k"],
                                   stride=lyr["s"], padding=lyr["p"],
                                   groups=lyr["g"], neg_slope=negative_slope,
                                   out_dtype=jnp.bfloat16, want_fmap=True)
        else:
            h, fm = dense_conv1d(h, lyr["w"], lyr["b"], K=lyr["k"],
                                 stride=lyr["s"], padding=lyr["p"],
                                 apply_act=True, neg_slope=negative_slope,
                                 out_dtype=jnp.bfloat16, want_fmap=True)
        if fm is None:
            # Small-channel layers: cheap fallback transpose to PyTorch (B, C, L).
            fm = jnp.swapaxes(h, 1, 2).astype(jnp.float32)
        fmaps.append(fm)
    post = layers[-1]
    score, _ = dense_conv1d(h, post["w"], post["b"], K=post["k"], stride=post["s"],
                            padding=post["p"], apply_act=False,
                            out_dtype=jnp.float32, want_fmap=False)
    return score[:, :, 0], fmaps                              # 'b 1 n -> b n'


def multi_combd_forward(x, params):
    # x: (B, N) raw audio  ==  PyTorch input before `rearrange(x, 'b n -> b 1 n')`
    x_nlc = x[:, :, None]                                     # (B, N, 1)
    x8down = pqmf_first_band(x, subbands=8, taps=192, cutoff=0.13, beta=10.0)
    x2down = pqmf_first_band(x, subbands=2, taps=256, cutoff=0.25, beta=10.0)

    all_scores, all_fmaps = [], []
    for inp, layers in zip((x8down, x2down, x_nlc), params["combds"]):
        s, f = combd_forward(inp, layers)
        all_scores.append(s)
        all_fmaps.extend(f)
    return all_scores, all_fmaps


# --------------------------------------------------------------------------
if __name__ == "__main__":
    key = jax.random.PRNGKey(0)
    kx, kp = jax.random.split(key)

    B, N, C = 2, 8192, 4  # smallest C compatible with the groups=256 layer
    x = jax.random.normal(kx, (B, N), jnp.float32)
    params = build_multi_combd_params(kp, C)

    scores, fmaps = multi_combd_forward(x, params)
    jax.block_until_ready(scores)
    jax.block_until_ready(fmaps)

    # Branch input lengths N/8, N/2, N; three stride-4 blocks -> score len L/64.
    expect = [(B, N // 8 // 64), (B, N // 2 // 64), (B, N // 64)]
    got = [tuple(s.shape) for s in scores]
    assert got == expect, (got, expect)
    assert len(fmaps) == 18
    assert all(f.dtype == jnp.float32 for f in fmaps)
    assert tuple(fmaps[-1].shape) == (B, 64 * C, N // 64), fmaps[-1].shape
    assert all(bool(jnp.all(jnp.isfinite(s))) for s in scores)
    print("KERNEL_OK")
</pallas_src>

<mosaic_0001>
module attributes {stable_mosaic.version = 11 : i64} {
  func.func @kernel(%arg0: i32, %arg1: i32, %arg2: memref<1x1024x200xbf16, #tpu.memory_space<vmem>>, %arg3: memref<200x1xbf16, #tpu.memory_space<vmem>>, %arg4: memref<1x1xf32, #tpu.memory_space<vmem>>, %arg5: memref<1x512x1xbf16, #tpu.memory_space<vmem>>, %arg6: memref<512x1xf32, #tpu.memory_space<vmem>>) attributes {dimension_semantics = [#tpu.dimension_semantics<parallel>, #tpu.dimension_semantics<parallel>], iteration_bounds = array<i64: 2, 2>, scalar_prefetch = 0 : i64, scratch_operands = 1 : i64, tpu.core_type = #tpu.core_type<tc>, window_params = [{transform_indices = @transform_0, window_bounds = array<i64: 1, 1024, 200>}, {pipeline_mode = #tpu.pipeline_mode<synchronous>, transform_indices = @transform_1, window_bounds = array<i64: 200, 1>}, {pipeline_mode = #tpu.pipeline_mode<synchronous>, transform_indices = @transform_2, window_bounds = array<i64: 1, 1>}, {transform_indices = @transform_3, window_bounds = array<i64: 1, 512, 1>}]} {
    %c512_i32 = arith.constant 512 : i32
    %0 = arith.muli %arg1, %c512_i32 : i32
    %1 = tpu.assume_multiple %0, 512 : i32
    %c0_i32 = arith.constant 0 : i32
    %2 = arith.addi %1, %c0_i32 : i32
    %c0 = arith.constant 0 : index
    %3 = arith.index_cast %2 : i32 to index
    %c0_0 = arith.constant 0 : index
    %4 = vector.load %arg2[%c0, %3, %c0_0] : memref<1x1024x200xbf16, #tpu.memory_space<vmem>>, vector<1x512x200xbf16>
    %5 = vector.shape_cast %4 : vector<1x512x200xbf16> to vector<512x200xbf16>
    %c0_1 = arith.constant 0 : index
    %c0_2 = arith.constant 0 : index
    %6 = vector.load %arg3[%c0_1, %c0_2] : memref<200x1xbf16, #tpu.memory_space<vmem>>, vector<200x1xbf16>
    %cst = arith.constant dense<0.000000e+00> : vector<512x1xf32>
    %7 = tpu.matmul %5, %6, %cst {dimension_numbers = #tpu.dot_dimension_numbers<[1], [0], [0], [1], [0, 0, 1, 1], [], []>} : vector<512x200xbf16>, vector<200x1xbf16>, vector<512x1xf32> -> vector<512x1xf32>
    %c0_3 = arith.constant 0 : index
    %c0_4 = arith.constant 0 : index
    %8 = vector.load %arg6[%c0_3, %c0_4] : memref<512x1xf32, #tpu.memory_space<vmem>>, vector<512x1xf32>
    tpu.vector_store %arg6[%c0_3, %c0_4], %7 {strides = array<i32>} : memref<512x1xf32, #tpu.memory_space<vmem>>, vector<512x1xf32>,
    %c0_5 = arith.constant 0 : index
    %c0_6 = arith.constant 0 : index
    %9 = vector.load %arg6[%c0_5, %c0_6] : memref<512x1xf32, #tpu.memory_space<vmem>>, vector<512x1xf32>
    %c0_7 = arith.constant 0 : index
    %c0_8 = arith.constant 0 : index
    %10 = vector.load %arg4[%c0_7, %c0_8] : memref<1x1xf32, #tpu.memory_space<vmem>>, vector<1x1xf32>
    %11 = vector.broadcast %10 : vector<1x1xf32> to vector<512x1xf32>
    %12 = arith.addf %9, %11 : vector<512x1xf32>
    %13 = arith.truncf %12 : vector<512x1xf32> to vector<512x1xbf16>
    %c0_9 = arith.constant 0 : index
    %c0_10 = arith.constant 0 : index
    %c0_11 = arith.constant 0 : index
    %14 = vector.load %arg5[%c0_9, %c0_10, %c0_11] : memref<1x512x1xbf16, #tpu.memory_space<vmem>>, vector<1x512x1xbf16>
    %15 = vector.shape_cast %14 : vector<1x512x1xbf16> to vector<512x1xbf16>
    %16 = vector.shape_cast %13 : vector<512x1xbf16> to vector<1x512x1xbf16>
    tpu.vector_store %arg5[%c0_9, %c0_10, %c0_11], %16 {strides = array<i32>} : memref<1x512x1xbf16, #tpu.memory_space<vmem>>, vector<1x512x1xbf16>,
    return
  }
  func.func @transform_0(%arg0: i32, %arg1: i32) -> (i32, i32, i32) {
    %c0_i32 = arith.constant 0 : i32
    %c0_i32_0 = arith.constant 0 : i32
    %c0_i32_1 = arith.constant 0 : i32
    return %arg0, %c0_i32, %c0_i32_0 : i32, i32, i32
  }
  func.func @transform_1(%arg0: i32, %arg1: i32) -> (i32, i32) {
    %c0_i32 = arith.constant 0 : i32
    %c0_i32_0 = arith.constant 0 : i32
    %c0_i32_1 = arith.constant 0 : i32
    return %c0_i32, %c0_i32_0 : i32, i32
  }
  func.func @transform_2(%arg0: i32, %arg1: i32) -> (i32, i32) {
    %c0_i32 = arith.constant 0 : i32
    %c0_i32_0 = arith.constant 0 : i32
    %c0_i32_1 = arith.constant 0 : i32
    return %c0_i32, %c0_i32_0 : i32, i32
  }
  func.func @transform_3(%arg0: i32, %arg1: i32) -> (i32, i32, i32) {
    %c0_i32 = arith.constant 0 : i32
    %c0_i32_0 = arith.constant 0 : i32
    return %arg0, %arg1, %c0_i32 : i32, i32, i32
  }
}

</mosaic_0001>

<llo_original>
// kernel: dense_conv1d.1
$region0: #{dense_conv1d.1}
  #allocation0 [shape = 'u32[]', space=smem, size = 0x4, offset = 0x4, fixed_abs, tag = 'smem constant byte address 0x4 - core index']
  #allocation1 [shape = 'u32[144,128]{1,0:T(1,128)}', space=vmem, size = 0x12000, scoped, tag = 'internal scratch']
  #allocation2 [shape = 'f32[512,1]{1,0:T(8,128)}', space=vmem, size = 0x40000, scoped, tag = 'scratch operand']
  #allocation3 [shape = 'f32[1,1]{1,0:T(1,128)S(1)}', space=vmem, size = 0x200, scoped, tag = 'scoped memory for dense_conv1d.1']
  %s0 = inlined_call_operand.vmem [shape: bf16[2,1024,200], index: 0, kind: input, shape index: {}]
  %s1 = inlined_call_operand.vmem [shape: bf16[200,1], index: 1, kind: input, shape index: {}]
  %s2 = inlined_call_operand.<no memory space> [shape: f32[1,1], index: 2, kind: input, shape index: {}]
  %s3 = inlined_call_operand.vmem [shape: bf16[2,1024,1], index: 3, kind: output, shape index: {}]
  %s4 = sld [smem:[#allocation0]]
  $region45: #{dense_conv1d.1} parent=0
    _
  %s6 = ssub.s32 1, %s4
  %s7 = scalar_select 0, %s6, %s4
  %v8 = vstv %s2
  %9 = vst [vmem:[#allocation3] sm:$0x1] %v8
  loop: start=0, step=1, limit=6
  $region2: #{dense_conv1d.1} parent=0 // loop_pre_header
    _
  $region3: #{dense_conv1d.1} parent=0 // loop_header
    %s11 = sphi 0, %s15
    %p12 = scmp.ge.s32.totalorder %s11, 6
    %s18 = sphi 0, %s30
    %s19 = sphi 0, %s26
    %s20 = sphi 0, %s18
    %s21 = sphi 0, %s19
    %s22 = sphi 0, %s20
    %s23 = sphi 0, %s21
    %s33 = sphi 0, %s35
    %s36 = sphi 0, %s33
    %s37 = sphi 0, %s36
    %s53 = sphi 0, %s37
    %s57 = sphi 0, %s57
    %s59 = sphi 0, %s57
    %s60 = sphi 0, %s59
    %s74 = sphi 0, %s60
    %s78 = sphi 0, %s78
    %s80 = sphi 0, %s78
    %s81 = sphi 0, %s80
    %s95 = sphi 0, %s81
    %s103 = sphi 0, %s105
    %s106 = sphi 0, %s103
    %s107 = sphi 0, %s106
    %s123 = sphi 0, %s107
  $region4: #{dense_conv1d.1} parent=0 // loop_header_branch
    %14 = sbr.rel (%p12) target = $region8
  $region5: #{dense_conv1d.1} parent=0 // loop_body
    %s16 = ssub.s32 %s11, 1
    %s17 = ssub.s32 %s11, 2
    %s24 = sadd.s32 1, %s19
    %p25 = scmp.ge.s32.totalorder %s24, 2
    %s26 = scalar_select %p25, 0, %s24
    %s27 = sadd.s32 1, %s18
    %s28 = scalar_select %p25, %s27, %s18
    %p29 = scmp.ge.s32.totalorder %s28, 2
    %s30 = scalar_select %p29, 0, %s28
    %s31 = ssub.s32 %s18, %s30
    %p32 = scmp.eq.s32.totalorder %s31, 0
    %s34 = sadd.s32 %s33, 1
    %s35 = scalar_select %p32, %s33, %s34
    %p38 = pneg %p32
    %p39 = scmp.eq.s32.totalorder %s11, 3
    %p40 = por %p38, %p39
    %p41 = scmp.ne.s32.totalorder %s33, %s36
    %p42 = scmp.eq.s32.totalorder %s11, 0
    %p43 = por %p41, %p42
    %p44 = scmp.ne.s32.totalorder %s33, %s36
    %p45 = scmp.eq.s32.totalorder %s16, 3
    %p46 = por %p44, %p45
    %p47 = scmp.ne.s32.totalorder %s36, %s37
    %p48 = scmp.eq.s32.totalorder %s16, 0
    %p49 = por %p47, %p48
    %p50 = scmp.ne.s32.totalorder %s36, %s37
    %p51 = scmp.eq.s32.totalorder %s17, 3
    %p52 = por %p50, %p51
    %p54 = scmp.ne.s32.totalorder %s37, %s53
    %p55 = scmp.eq.s32.totalorder %s17, 0
    %p56 = por %p54, %p55
    %s58 = sadd.s32 %s57, 1
    %p61 = scmp.eq.s32.totalorder %s11, 3
    %p62 = scmp.ne.s32.totalorder %s57, %s59
    %p63 = scmp.eq.s32.totalorder %s11, 0
    %p64 = por %p62, %p63
    %p65 = scmp.ne.s32.totalorder %s57, %s59
    %p66 = scmp.eq.s32.totalorder %s16, 3
    %p67 = por %p65, %p66
    %p68 = scmp.ne.s32.totalorder %s59, %s60
    %p69 = scmp.eq.s32.totalorder %s16, 0
    %p70 = por %p68, %p69
    %p71 = scmp.ne.s32.totalorder %s59, %s60
    %p72 = scmp.eq.s32.totalorder %s17, 3
    %p73 = por %p71, %p72
    %p75 = scmp.ne.s32.totalorder %s60, %s74
    %p76 = scmp.eq.s32.totalorder %s17, 0
    %p77 = por %p75, %p76
    %s79 = sadd.s32 %s78, 1
    %p82 = scmp.eq.s32.totalorder %s11, 3
    %p83 = scmp.ne.s32.totalorder %s78, %s80
    %p84 = scmp.eq.s32.totalorder %s11, 0
    %p85 = por %p83, %p84
    %p86 = scmp.ne.s32.totalorder %s78, %s80
    %p87 = scmp.eq.s32.totalorder %s16, 3
    %p88 = por %p86, %p87
    %p89 = scmp.ne.s32.totalorder %s80, %s81
    %p90 = scmp.eq.s32.totalorder %s16, 0
    %p91 = por %p89, %p90
    %p92 = scmp.ne.s32.totalorder %s80, %s81
    %p93 = scmp.eq.s32.totalorder %s17, 3
    %p94 = por %p92, %p93
    %p96 = scmp.ne.s32.totalorder %s81, %s95
    %p97 = scmp.eq.s32.totalorder %s17, 0
    %p98 = por %p96, %p97
    %s99 = ssub.s32 %s18, %s30
    %s100 = ssub.s32 %s19, %s26
    %s101 = sor.u32 %s99, %s100
    %p102 = scmp.eq.s32.totalorder %s101, 0
    %s104 = sadd.s32 %s103, 1
    %s105 = scalar_select %p102, %s103, %s104
    %p108 = pneg %p102
    %p109 = scmp.eq.s32.totalorder %s11, 3
    %p110 = por %p108, %p109
    %p111 = scmp.ne.s32.totalorder %s103, %s106
    %p112 = scmp.eq.s32.totalorder %s11, 0
    %p113 = por %p111, %p112
    %p114 = scmp.ne.s32.totalorder %s103, %s106
    %p115 = scmp.eq.s32.totalorder %s16, 3
    %p116 = por %p114, %p115
    %p117 = scmp.ne.s32.totalorder %s106, %s107
    %p118 = scmp.eq.s32.totalorder %s16, 0
    %p119 = por %p117, %p118
    %p120 = scmp.ne.s32.totalorder %s106, %s107
    %p121 = scmp.eq.s32.totalorder %s17, 3
    %p122 = por %p120, %p121
    %p124 = scmp.ne.s32.totalorder %s107, %s123
    %p125 = scmp.eq.s32.totalorder %s17, 0
    %p126 = por %p124, %p125
    %p127 = scmp.le.s32.totalorder 1, %s11
    %p128 = scmp.lt.s32.totalorder %s11, 5
    %p129 = pnand %p127, %p128
    %p130 = pneg %p129
    // Predicated region
    $region9: #{dense_conv1d.1} parent=5 // pred_check
      _
    $region10: #{dense_conv1d.1} parent=5 // pred_check_branch
      %132 = sbr.rel (%p129) target = $region12
    $region11: #{dense_conv1d.1} parent=5 // pred_region
      %s133 = ssub.s32 %s11, 1
      // Predicated region
      $region13: #{dense_conv1d.1} parent=11 // pred_check
        %p134 = pneg %p70
      $region14: #{dense_conv1d.1} parent=11 // pred_check_branch
        %136 = sbr.rel (%p134) target = $region16
      $region15: #{dense_conv1d.1} parent=11 // pred_region
        _
      $region16: #{dense_conv1d.1} parent=11 // pred_fallthru
        _
      // Predicated region
      $region17: #{dense_conv1d.1} parent=11 // pred_check
        %p137 = pneg %p91
      $region18: #{dense_conv1d.1} parent=11 // pred_check_branch
        %139 = sbr.rel (%p137) target = $region20
      $region19: #{dense_conv1d.1} parent=11 // pred_region
        _
      $region20: #{dense_conv1d.1} parent=11 // pred_fallthru
        _
    $region12: #{dense_conv1d.1} parent=5 // pred_fallthru
      _
    %p140 = scmp.lt.s32.totalorder %s11, 4
    // Predicated region
    $region21: #{dense_conv1d.1} parent=5 // pred_check
      %p141 = pneg %p140
    $region22: #{dense_conv1d.1} parent=5 // pred_check_branch
      %143 = sbr.rel (%p141) target = $region24
    $region23: #{dense_conv1d.1} parent=5 // pred_region
      // Predicated region
      $region25: #{dense_conv1d.1} parent=23 // pred_check
        %p144 = pneg %p43
      $region26: #{dense_conv1d.1} parent=23 // pred_check_branch
        %146 = sbr.rel (%p144) target = $region28
      $region27: #{dense_conv1d.1} parent=23 // pred_region
        %p147 = scmp.lt.s32.totalorder %s18, 1
        %s148 = scalar_select %p147, %s18, 1
        %s149 = smul.addr %s148, 256
        %s150 = smul.addr %s149, 4
        %s151 = scalar_lea.vmem %s0, %s150
      $region28: #{dense_conv1d.1} parent=23 // pred_fallthru
        _
    $region24: #{dense_conv1d.1} parent=5 // pred_fallthru
      _
    %p152 = scmp.le.s32.totalorder 1, %s11
    %p153 = scmp.lt.s32.totalorder %s11, 5
    %p154 = pnand %p152, %p153
    %p155 = pneg %p154
    // Predicated region
    $region29: #{dense_conv1d.1} parent=5 // pred_check
      _
    $region30: #{dense_conv1d.1} parent=5 // pred_check_branch
      %157 = sbr.rel (%p154) target = $region32
    $region31: #{dense_conv1d.1} parent=5 // pred_region
      %s158 = ssub.s32 %s11, 1
      %p159 = scmp.lt.s32.totalorder %s20, 1
      %s160 = scalar_select %p159, %s20, 1
      %s161 = smul.addr %s160, 256
      %s162 = smul.addr %s161, 4
      %s163 = scalar_lea.vmem %s0, %s162
      %p164 = pneg %p49
      %p165 = pneg %p46
      %p166 = pneg %p70
      %p167 = pneg %p67
      %p168 = pneg %p91
      %p169 = pneg %p88
      %p170 = pneg %p119
      %p171 = pneg %p116
      %s172 = smul.u32 64, %s21
      %p173 = scmp.lt.s32.totalorder %s20, 1
      %s174 = scalar_select %p173, %s20, 1
      %p175 = scmp.lt.s32.totalorder %s172, 127
      %s176 = scalar_select %p175, %s172, 127
      %s177 = smul.addr %s174, 128
      %s178 = sadd.s32 %s176, %s177
      %s179 = smul.addr %s178, 4
      %s180 = scalar_lea.vmem %s3, %s179
      %p181 = scmp.lt.s32.totalorder %s20, 1
      %s182 = scalar_select %p181, %s20, 1
      %s183 = smul.addr %s182, 256
      %s184 = smul.addr %s183, 4
      %s185 = scalar_lea.vmem %s0, %s184
      %s186 = smul.u32 64, %s21
      %p187 = scmp.lt.s32.totalorder %s20, 1
      %s188 = scalar_select %p187, %s20, 1
      %p189 = scmp.lt.s32.totalorder %s186, 127
      %s190 = scalar_select %p189, %s186, 127
      %s191 = smul.addr %s188, 128
      %s192 = sadd.s32 %s190, %s191
      %s193 = smul.addr %s192, 4
      %s194 = scalar_lea.vmem %s3, %s193
      %s195 = smul.u32 64, %s21
      %s197 = smul.u32 %s21, 512
      %s198 = sshra.s32 %s197, 3
      %s199 = sand.u32 %s197, 7
      %s200 = smul.u32 %s198, 2
      %s201 = smul.addr %s200, 4
      %s202 = scalar_lea.vmem %s185, %s201
      %v203 = vld [vmem:[%s202] sm:$0xff]
      %v204 = vld [vmem:[%s202 + $0x8] sm:$0xff]
      %v205 = vld [vmem:[%s202 + $0x10] sm:$0xff]
      %v206 = vld [vmem:[%s202 + $0x18] sm:$0xff]
      %v207 = vld [vmem:[%s202 + $0x20] sm:$0xff]
      %v208 = vld [vmem:[%s202 + $0x28] sm:$0xff]
      %v209 = vld [vmem:[%s202 + $0x30] sm:$0xff]
      %v210 = vld [vmem:[%s202 + $0x38] sm:$0xff]
      %v211 = vld [vmem:[%s202 + $0x40] sm:$0xff]
      %v212 = vld [vmem:[%s202 + $0x48] sm:$0xff]
      %v213 = vld [vmem:[%s202 + $0x50] sm:$0xff]
      %v214 = vld [vmem:[%s202 + $0x58] sm:$0xff]
      %v215 = vld [vmem:[%s202 + $0x60] sm:$0xff]
      %v216 = vld [vmem:[%s202 + $0x68] sm:$0xff]
      %v217 = vld [vmem:[%s202 + $0x70] sm:$0xff]
      %v218 = vld [vmem:[%s202 + $0x78] sm:$0xff]
      %v219 = vld [vmem:[%s202 + $0x80] sm:$0xff]
      %v220 = vld [vmem:[%s202 + $0x88] sm:$0xff]
      %v221 = vld [vmem:[%s202 + $0x90] sm:$0xff]
      %v222 = vld [vmem:[%s202 + $0x98] sm:$0xff]
      %v223 = vld [vmem:[%s202 + $0xa0] sm:$0xff]
      %v224 = vld [vmem:[%s202 + $0xa8] sm:$0xff]
      %v225 = vld [vmem:[%s202 + $0xb0] sm:$0xff]
      %v226 = vld [vmem:[%s202 + $0xb8] sm:$0xff]
      %v227 = vld [vmem:[%s202 + $0xc0] sm:$0xff]
      %v228 = vld [vmem:[%s202 + $0xc8] sm:$0xff]
      %v229 = vld [vmem:[%s202 + $0xd0] sm:$0xff]
      %v230 = vld [vmem:[%s202 + $0xd8] sm:$0xff]
      %v231 = vld [vmem:[%s202 + $0xe0] sm:$0xff]
      %v232 = vld [vmem:[%s202 + $0xe8] sm:$0xff]
      %v233 = vld [vmem:[%s202 + $0xf0] sm:$0xff]
      %v234 = vld [vmem:[%s202 + $0xf8] sm:$0xff]
      %v235 = vld [vmem:[%s202 + $0x100] sm:$0xff]
      %v236 = vld [vmem:[%s202 + $0x108] sm:$0xff]
      %v237 = vld [vmem:[%s202 + $0x110] sm:$0xff]
      %v238 = vld [vmem:[%s202 + $0x118] sm:$0xff]
      %v239 = vld [vmem:[%s202 + $0x120] sm:$0xff]
      %v240 = vld [vmem:[%s202 + $0x128] sm:$0xff]
      %v241 = vld [vmem:[%s202 + $0x130] sm:$0xff]
      %v242 = vld [vmem:[%s202 + $0x138] sm:$0xff]
      %v243 = vld [vmem:[%s202 + $0x140] sm:$0xff]
      %v244 = vld [vmem:[%s202 + $0x148] sm:$0xff]
      %v245 = vld [vmem:[%s202 + $0x150] sm:$0xff]
      %v246 = vld [vmem:[%s202 + $0x158] sm:$0xff]
      %v247 = vld [vmem:[%s202 + $0x160] sm:$0xff]
      %v248 = vld [vmem:[%s202 + $0x168] sm:$0xff]
      %v249 = vld [vmem:[%s202 + $0x170] sm:$0xff]
      %v250 = vld [vmem:[%s202 + $0x178] sm:$0xff]
      %v251 = vld [vmem:[%s202 + $0x180] sm:$0xff]
      %v252 = vld [vmem:[%s202 + $0x188] sm:$0xff]
      %v253 = vld [vmem:[%s202 + $0x190] sm:$0xff]
      %v254 = vld [vmem:[%s202 + $0x198] sm:$0xff]
      %v255 = vld [vmem:[%s202 + $0x1a0] sm:$0xff]
      %v256 = vld [vmem:[%s202 + $0x1a8] sm:$0xff]
      %v257 = vld [vmem:[%s202 + $0x1b0] sm:$0xff]
      %v258 = vld [vmem:[%s202 + $0x1b8] sm:$0xff]
      %v259 = vld [vmem:[%s202 + $0x1c0] sm:$0xff]
      %v260 = vld [vmem:[%s202 + $0x1c8] sm:$0xff]
      %v261 = vld [vmem:[%s202 + $0x1d0] sm:$0xff]
      %v262 = vld [vmem:[%s202 + $0x1d8] sm:$0xff]
      %v263 = vld [vmem:[%s202 + $0x1e0] sm:$0xff]
      %v264 = vld [vmem:[%s202 + $0x1e8] sm:$0xff]
      %v265 = vld [vmem:[%s202 + $0x1f0] sm:$0xff]
      %v266 = vld [vmem:[%s202 + $0x1f8] sm:$0xff]
      %v267 = vld [vmem:[%s1] sm:$0xf]
      %v268 = vld [vmem:[%s1 + $0x4] sm:$0xf]
      %v269 = vld [vmem:[%s1 + $0x8] sm:$0xf]
      %v270 = vld [vmem:[%s1 + $0xc] sm:$0xf]
      %v271 = vld [vmem:[%s1 + $0x10] sm:$0xf]
      %v272 = vld [vmem:[%s1 + $0x14] sm:$0xf]
      %v273 = vld [vmem:[%s1 + $0x18] sm:$0xf]
      %v274 = vld [vmem:[%s1 + $0x1c] sm:$0xf]
      %v275 = vld [vmem:[%s1 + $0x20] sm:$0xf]
      %v276 = vld [vmem:[%s1 + $0x24] sm:$0xf]
      %v277 = vld [vmem:[%s1 + $0x28] sm:$0xf]
      %v278 = vld [vmem:[%s1 + $0x2c] sm:$0xf]
      %v279 = vld [vmem:[%s1 + $0x30] sm:$0xf]
      %v280 = vld [vmem:[%s1 + $0x34] sm:$0xf]
      %v281 = vld [vmem:[%s1 + $0x38] sm:$0xf]
      %v282 = vld [vmem:[%s1 + $0x3c] sm:$0xf]
      %v283 = vld [vmem:[%s1 + $0x40] sm:$0xf]
      %v284 = vld [vmem:[%s1 + $0x44] sm:$0xf]
      %v285 = vld [vmem:[%s1 + $0x48] sm:$0xf]
      %v286 = vld [vmem:[%s1 + $0x4c] sm:$0xf]
      %v287 = vld [vmem:[%s1 + $0x50] sm:$0xf]
      %v288 = vld [vmem:[%s1 + $0x54] sm:$0xf]
      %v289 = vld [vmem:[%s1 + $0x58] sm:$0xf]
      %v290 = vld [vmem:[%s1 + $0x5c] sm:$0xf]
      %v291 = vld [vmem:[%s1 + $0x60] sm:$0xf]
      %v356 = vunpack.c.l.b16 %v203
      %v357 = vunpack.c.h.b16 %v203
      %v358 = vunpack.c.l.b16 %v204
      %v359 = vunpack.c.h.b16 %v204
      %v360 = vunpack.c.l.b16 %v205
      %v361 = vunpack.c.h.b16 %v205
      %v362 = vunpack.c.l.b16 %v206
      %v363 = vunpack.c.h.b16 %v206
      %v364 = vunpack.c.l.b16 %v207
      %v365 = vunpack.c.h.b16 %v207
      %v366 = vunpack.c.l.b16 %v208
      %v367 = vunpack.c.h.b16 %v208
      %v368 = vunpack.c.l.b16 %v209
      %v369 = vunpack.c.h.b16 %v209
      %v370 = vunpack.c.l.b16 %v210
      %v371 = vunpack.c.h.b16 %v210
      %v372 = vunpack.c.l.b16 %v211
      %v373 = vunpack.c.h.b16 %v211
      %v374 = vunpack.c.l.b16 %v212
      %v375 = vunpack.c.h.b16 %v212
      %v376 = vunpack.c.l.b16 %v213
      %v377 = vunpack.c.h.b16 %v213
      %v378 = vunpack.c.l.b16 %v214
      %v379 = vunpack.c.h.b16 %v214
      %v380 = vunpack.c.l.b16 %v215
      %v381 = vunpack.c.h.b16 %v215
      %v382 = vunpack.c.l.b16 %v216
      %v383 = vunpack.c.h.b16 %v216
      %v384 = vunpack.c.l.b16 %v217
      %v385 = vunpack.c.h.b16 %v217
      %v386 = vunpack.c.l.b16 %v218
      %v387 = vunpack.c.h.b16 %v218
      %v388 = vunpack.c.l.b16 %v219
      %v389 = vunpack.c.h.b16 %v219
      %v390 = vunpack.c.l.b16 %v220
      %v391 = vunpack.c.h.b16 %v220
      %v392 = vunpack.c.l.b16 %v221
      %v393 = vunpack.c.h.b16 %v221
      %v394 = vunpack.c.l.b16 %v222
      %v395 = vunpack.c.h.b16 %v222
      %v396 = vunpack.c.l.b16 %v223
      %v397 = vunpack.c.h.b16 %v223
      %v398 = vunpack.c.l.b16 %v224
      %v399 = vunpack.c.h.b16 %v224
      %v400 = vunpack.c.l.b16 %v225
      %v401 = vunpack.c.h.b16 %v225
      %v402 = vunpack.c.l.b16 %v226
      %v403 = vunpack.c.h.b16 %v226
      %v404 = vunpack.c.l.b16 %v227
      %v405 = vunpack.c.h.b16 %v227
      %v406 = vunpack.c.l.b16 %v228
      %v407 = vunpack.c.h.b16 %v228
      %v408 = vunpack.c.l.b16 %v229
      %v409 = vunpack.c.h.b16 %v229
      %v410 = vunpack.c.l.b16 %v230
      %v411 = vunpack.c.h.b16 %v230
      %v412 = vunpack.c.l.b16 %v231
      %v413 = vunpack.c.h.b16 %v231
      %v414 = vunpack.c.l.b16 %v232
      %v415 = vunpack.c.h.b16 %v232
      %v416 = vunpack.c.l.b16 %v233
      %v417 = vunpack.c.h.b16 %v233
      %v418 = vunpack.c.l.b16 %v234
      %v419 = vunpack.c.h.b16 %v234
      %v420 = vunpack.c.l.b16 %v235
      %v421 = vunpack.c.h.b16 %v235
      %v422 = vunpack.c.l.b16 %v236
      %v423 = vunpack.c.h.b16 %v236
      %v424 = vunpack.c.l.b16 %v237
      %v425 = vunpack.c.h.b16 %v237
      %v426 = vunpack.c.l.b16 %v238
      %v427 = vunpack.c.h.b16 %v238
      %v428 = vunpack.c.l.b16 %v239
      %v429 = vunpack.c.h.b16 %v239
      %v430 = vunpack.c.l.b16 %v240
      %v431 = vunpack.c.h.b16 %v240
      %v432 = vunpack.c.l.b16 %v241
      %v433 = vunpack.c.h.b16 %v241
      %v434 = vunpack.c.l.b16 %v242
      %v435 = vunpack.c.h.b16 %v242
      %v436 = vunpack.c.l.b16 %v243
      %v437 = vunpack.c.h.b16 %v243
      %v438 = vunpack.c.l.b16 %v244
      %v439 = vunpack.c.h.b16 %v244
      %v440 = vunpack.c.l.b16 %v245
      %v441 = vunpack.c.h.b16 %v245
      %v442 = vunpack.c.l.b16 %v246
      %v443 = vunpack.c.h.b16 %v246
      %v444 = vunpack.c.l.b16 %v247
      %v445 = vunpack.c.h.b16 %v247
      %v446 = vunpack.c.l.b16 %v248
      %v447 = vunpack.c.h.b16 %v248
      %v448 = vunpack.c.l.b16 %v249
      %v449 = vunpack.c.h.b16 %v249
      %v450 = vunpack.c.l.b16 %v250
      %v451 = vunpack.c.h.b16 %v250
      %v452 = vunpack.c.l.b16 %v251
      %v453 = vunpack.c.h.b16 %v251
      %v454 = vunpack.c.l.b16 %v252
      %v455 = vunpack.c.h.b16 %v252
      %v456 = vunpack.c.l.b16 %v253
      %v457 = vunpack.c.h.b16 %v253
      %v458 = vunpack.c.l.b16 %v254
      %v459 = vunpack.c.h.b16 %v254
      %v460 = vunpack.c.l.b16 %v255
      %v461 = vunpack.c.h.b16 %v255
      %v462 = vunpack.c.l.b16 %v256
      %v463 = vunpack.c.h.b16 %v256
      %v464 = vunpack.c.l.b16 %v257
      %v465 = vunpack.c.h.b16 %v257
      %v466 = vunpack.c.l.b16 %v258
      %v467 = vunpack.c.h.b16 %v258
      %v468 = vunpack.c.l.b16 %v259
      %v469 = vunpack.c.h.b16 %v259
      %v470 = vunpack.c.l.b16 %v260
      %v471 = vunpack.c.h.b16 %v260
      %v472 = vunpack.c.l.b16 %v261
      %v473 = vunpack.c.h.b16 %v261
      %v474 = vunpack.c.l.b16 %v262
      %v475 = vunpack.c.h.b16 %v262
      %v476 = vunpack.c.l.b16 %v263
      %v477 = vunpack.c.h.b16 %v263
      %v478 = vunpack.c.l.b16 %v264
      %v479 = vunpack.c.h.b16 %v264
      %v480 = vunpack.c.l.b16 %v265
      %v481 = vunpack.c.h.b16 %v265
      %v482 = vunpack.c.l.b16 %v266
      %v483 = vunpack.c.h.b16 %v266
      %v484 = vpack.c.b16 %v358, %v356
      %v485 = vpack.c.b16 %v359, %v357
      %v486 = vpack.c.b16 %v362, %v360
      %v487 = vpack.c.b16 %v363, %v361
      %v488 = vpack.c.b16 %v366, %v364
      %v489 = vpack.c.b16 %v367, %v365
      %v490 = vpack.c.b16 %v370, %v368
      %v491 = vpack.c.b16 %v371, %v369
      %v492 = vpack.c.b16 %v374, %v372
      %v493 = vpack.c.b16 %v375, %v373
      %v494 = vpack.c.b16 %v378, %v376
      %v495 = vpack.c.b16 %v379, %v377
      %v496 = vpack.c.b16 %v382, %v380
      %v497 = vpack.c.b16 %v383, %v381
      %v498 = vpack.c.b16 %v386, %v384
      %v499 = vpack.c.b16 %v387, %v385
      %v500 = vpack.c.b16 %v390, %v388
      %v501 = vpack.c.b16 %v391, %v389
      %v502 = vpack.c.b16 %v394, %v392
      %v503 = vpack.c.b16 %v395, %v393
      %v504 = vpack.c.b16 %v398, %v396
      %v505 = vpack.c.b16 %v399, %v397
      %v506 = vpack.c.b16 %v402, %v400
      %v507 = vpack.c.b16 %v403, %v401
      %v508 = vpack.c.b16 %v406, %v404
      %v509 = vpack.c.b16 %v407, %v405
      %v510 = vpack.c.b16 %v410, %v408
      %v511 = vpack.c.b16 %v411, %v409
      %v512 = vpack.c.b16 %v414, %v412
      %v513 = vpack.c.b16 %v415, %v413
      %v514 = vpack.c.b16 %v418, %v416
      %v515 = vpack.c.b16 %v419, %v417
      %v516 = vpack.c.b16 %v422, %v420
      %v517 = vpack.c.b16 %v423, %v421
      %v518 = vpack.c.b16 %v426, %v424
      %v519 = vpack.c.b16 %v427, %v425
      %v520 = vpack.c.b16 %v430, %v428
      %v521 = vpack.c.b16 %v431, %v429
      %v522 = vpack.c.b16 %v434, %v432
      %v523 = vpack.c.b16 %v435, %v433
      %v524 = vpack.c.b16 %v438, %v436
      %v525 = vpack.c.b16 %v439, %v437
      %v526 = vpack.c.b16 %v442, %v440
      %v527 = vpack.c.b16 %v443, %v441
      %v528 = vpack.c.b16 %v446, %v444
      %v529 = vpack.c.b16 %v447, %v445
      %v530 = vpack.c.b16 %v450, %v448
      %v531 = vpack.c.b16 %v451, %v449
      %v532 = vpack.c.b16 %v454, %v452
      %v533 = vpack.c.b16 %v455, %v453
      %v534 = vpack.c.b16 %v458, %v456
      %v535 = vpack.c.b16 %v459, %v457
      %v536 = vpack.c.b16 %v462, %v460
      %v537 = vpack.c.b16 %v463, %v461
      %v538 = vpack.c.b16 %v466, %v464
      %v539 = vpack.c.b16 %v467, %v465
      %v540 = vpack.c.b16 %v470, %v468
      %v541 = vpack.c.b16 %v471, %v469
      %v542 = vpack.c.b16 %v474, %v472
      %v543 = vpack.c.b16 %v475, %v473
      %v544 = vpack.c.b16 %v478, %v476
      %v545 = vpack.c.b16 %v479, %v477
      %v546 = vpack.c.b16 %v482, %v480
      %v547 = vpack.c.b16 %v483, %v481
      %v605 = vunpack.c.l.b16 %v267
      %v606 = vunpack.c.l.b16 %v268
      %v607 = vunpack.c.l.b16 %v269
      %v608 = vunpack.c.l.b16 %v270
      %v609 = vunpack.c.l.b16 %v271
      %v610 = vunpack.c.l.b16 %v272
      %v611 = vunpack.c.l.b16 %v273
      %v612 = vunpack.c.l.b16 %v274
      %v613 = vunpack.c.l.b16 %v275
      %v614 = vunpack.c.l.b16 %v276
      %v615 = vunpack.c.l.b16 %v277
      %v616 = vunpack.c.l.b16 %v278
      %v617 = vunpack.c.l.b16 %v279
      %v618 = vunpack.c.l.b16 %v280
      %v619 = vunpack.c.l.b16 %v281
      %v620 = vunpack.c.l.b16 %v282
      %v621 = vunpack.c.l.b16 %v283
      %v622 = vunpack.c.l.b16 %v284
      %v623 = vunpack.c.l.b16 %v285
      %v624 = vunpack.c.l.b16 %v286
      %v625 = vunpack.c.l.b16 %v287
      %v626 = vunpack.c.l.b16 %v288
      %v627 = vunpack.c.l.b16 %v289
      %v628 = vunpack.c.l.b16 %v290
      %v629 = vunpack.c.l.b16 %v291
      %v630 = vpack.c.b16 %v606, %v605
      %v631 = vpack.c.b16 %v608, %v607
      %v632 = vpack.c.b16 %v610, %v609
      %v633 = vpack.c.b16 %v612, %v611
      %v634 = vpack.c.b16 %v614, %v613
      %v635 = vpack.c.b16 %v616, %v615
      %v636 = vpack.c.b16 %v618, %v617
      %v637 = vpack.c.b16 %v620, %v619
      %v638 = vpack.c.b16 %v622, %v621
      %v639 = vpack.c.b16 %v624, %v623
      %v640 = vpack.c.b16 %v626, %v625
      %v641 = vpack.c.b16 %v628, %v627
      %v642 = vpack.c.b16 %v629, %v629
      %vm655 = vcmask 588800
      %v657 = vsel %vm655, %v485, 0
      %v660 = vsel %vm655, %v487, 0
      %v663 = vsel %vm655, %v489, 0
      %v666 = vsel %vm655, %v491, 0
      %v669 = vsel %vm655, %v493, 0
      %v672 = vsel %vm655, %v495, 0
      %v675 = vsel %vm655, %v497, 0
      %v678 = vsel %vm655, %v499, 0
      %v681 = vsel %vm655, %v501, 0
      %v684 = vsel %vm655, %v503, 0
      %v687 = vsel %vm655, %v505, 0
      %v690 = vsel %vm655, %v507, 0
      %v693 = vsel %vm655, %v509, 0
      %v696 = vsel %vm655, %v511, 0
      %v699 = vsel %vm655, %v513, 0
      %v702 = vsel %vm655, %v515, 0
      %v705 = vsel %vm655, %v517, 0
      %v708 = vsel %vm655, %v519, 0
      %v711 = vsel %vm655, %v521, 0
      %v714 = vsel %vm655, %v523, 0
      %v717 = vsel %vm655, %v525, 0
      %v720 = vsel %vm655, %v527, 0
      %v723 = vsel %vm655, %v529, 0
      %v726 = vsel %vm655, %v531, 0
      %v729 = vsel %vm655, %v533, 0
      %v732 = vsel %vm655, %v535, 0
      %v735 = vsel %vm655, %v537, 0
      %v738 = vsel %vm655, %v539, 0
      %v741 = vsel %vm655, %v541, 0
      %v744 = vsel %vm655, %v543, 0
      %v747 = vsel %vm655, %v545, 0
      %v750 = vsel %vm655, %v547, 0
      %vm752 = vcmask 1043456
      %v754 = vsel %vm752, %v642, 0
      %756 = vmatprep.subr.bf16.mxu0 0
      %757 = vmatpush1.bf16.msra.mxu0 %v637
      %758 = vmatprep.subr.bf16.mxu0 0
      %759 = vmatpush1.bf16.msra.mxu0 %v636
      %760 = vmatprep.subr.bf16.mxu0 0
      %761 = vmatpush1.bf16.msra.mxu0 %v635
      %762 = vmatprep.subr.bf16.mxu0 0
      %763 = vmatpush1.bf16.msra.mxu0 %v634
      %764 = vmatprep.subr.bf16.mxu0 0
      %765 = vmatpush1.bf16.msra.mxu0 %v633
      %766 = vmatprep.subr.bf16.mxu0 0
      %767 = vmatpush1.bf16.msra.mxu0 %v632
      %768 = vmatprep.subr.bf16.mxu0 0
      %769 = vmatpush1.bf16.msra.mxu0 %v631
      %770 = vmatprep.subr.bf16.mxu0 0
      %771 = vmatpush1.bf16.msra.mxu0 %v630
      %772 = vmatprep.subr.bf16.mxu0 0
      %773 = vmatpush2.bf16.msra.mxu0 0
      %774 = vmatprep.subr.bf16.mxu0 0
      %775 = vmatpush2.bf16.msra.mxu0 0
      %776 = vmatprep.subr.bf16.mxu0 0
      %777 = vmatpush2.bf16.msra.mxu0 0
      %778 = vmatprep.subr.bf16.mxu0 0
      %779 = vmatpush2.bf16.msra.mxu0 %v754
      %780 = vmatprep.subr.bf16.mxu0 0
      %781 = vmatpush2.bf16.msra.mxu0 %v641
      %782 = vmatprep.subr.bf16.mxu0 0
      %783 = vmatpush2.bf16.msra.mxu0 %v640
      %784 = vmatprep.subr.bf16.mxu0 0
      %785 = vmatpush2.bf16.msra.mxu0 %v639
      %786 = vmatprep.subr.bf16.mxu0 0
      %787 = vmatpush2.bf16.msra.mxu0 %v638
      %788 = vmatprep.mubr.bf16.mxu0 %v657
      %789 = vmatmul.mubr.bf16.gmra.mxu0 %v484
      %v790 = vpop.f32.mrf.mxu0
      %v791 = vadd.f32 0.0, %v790
      %v792 = vpop.f32.mrf.mxu0
      %v793 = vpop.f32.mrf.mxu0
      %v794 = vadd.f32 0.0, %v793
      %v795 = vpop.f32.mrf.mxu0
      %796 = vmatprep.mubr.bf16.mxu0 %v660
      %797 = vmatmul.mubr.bf16.gmra.mxu0 %v486
      %v798 = vpop.f32.mrf.mxu0
      %v799 = vadd.f32 0.0, %v798
      %v800 = vpop.f32.mrf.mxu0
      %v801 = vpop.f32.mrf.mxu0
      %v802 = vadd.f32 0.0, %v801
      %v803 = vpop.f32.mrf.mxu0
      %804 = vmatprep.mubr.bf16.mxu0 %v663
      %805 = vmatmul.mubr.bf16.gmra.mxu0 %v488
      %v806 = vpop.f32.mrf.mxu0
      %v807 = vadd.f32 0.0, %v806
      %v808 = vpop.f32.mrf.mxu0
      %v809 = vpop.f32.mrf.mxu0
      %v810 = vadd.f32 0.0, %v809
      %v811 = vpop.f32.mrf.mxu0
      %812 = vmatprep.mubr.bf16.mxu0 %v666
      %813 = vmatmul.mubr.bf16.gmra.mxu0 %v490
      %v814 = vpop.f32.mrf.mxu0
      %v815 = vadd.f32 0.0, %v814
      %v816 = vpop.f32.mrf.mxu0
      %v817 = vpop.f32.mrf.mxu0
      %v818 = vadd.f32 0.0, %v817
      %v819 = vpop.f32.mrf.mxu0
      %820 = vmatprep.mubr.bf16.mxu0 %v669
      %821 = vmatmul.mubr.bf16.gmra.mxu0 %v492
      %v822 = vpop.f32.mrf.mxu0
      %v823 = vadd.f32 0.0, %v822
      %v824 = vpop.f32.mrf.mxu0
      %v825 = vpop.f32.mrf.mxu0
      %v826 = vadd.f32 0.0, %v825
      %v827 = vpop.f32.mrf.mxu0
      %828 = vmatprep.mubr.bf16.mxu0 %v672
      %829 = vmatmul.mubr.bf16.gmra.mxu0 %v494
      %v830 = vpop.f32.mrf.mxu0
      %v831 = vadd.f32 0.0, %v830
      %v832 = vpop.f32.mrf.mxu0
      %v833 = vpop.f32.mrf.mxu0
      %v834 = vadd.f32 0.0, %v833
      %v835 = vpop.f32.mrf.mxu0
      %836 = vmatprep.mubr.bf16.mxu0 %v675
      %837 = vmatmul.mubr.bf16.gmra.mxu0 %v496
      %v838 = vpop.f32.mrf.mxu0
      %v839 = vadd.f32 0.0, %v838
      %v840 = vpop.f32.mrf.mxu0
      %v841 = vpop.f32.mrf.mxu0
      %v842 = vadd.f32 0.0, %v841
      %v843 = vpop.f32.mrf.mxu0
      %844 = vmatprep.mubr.bf16.mxu0 %v678
      %845 = vmatmul.mubr.bf16.gmra.mxu0 %v498
      %v846 = vpop.f32.mrf.mxu0
      %v847 = vadd.f32 0.0, %v846
      %v848 = vpop.f32.mrf.mxu0
      %v849 = vpop.f32.mrf.mxu0
      %v850 = vadd.f32 0.0, %v849
      %v851 = vpop.f32.mrf.mxu0
      %852 = vmatprep.mubr.bf16.mxu0 %v681
      %853 = vmatmul.mubr.bf16.gmra.mxu0 %v500
      %v854 = vpop.f32.mrf.mxu0
      %v855 = vadd.f32 0.0, %v854
      %v856 = vpop.f32.mrf.mxu0
      %v857 = vpop.f32.mrf.mxu0
      %v858 = vadd.f32 0.0, %v857
      %v859 = vpop.f32.mrf.mxu0
      %860 = vmatprep.mubr.bf16.mxu0 %v684
      %861 = vmatmul.mubr.bf16.gmra.mxu0 %v502
      %v862 = vpop.f32.mrf.mxu0
      %v863 = vadd.f32 0.0, %v862
      %v864 = vpop.f32.mrf.mxu0
      %v865 = vpop.f32.mrf.mxu0
      %v866 = vadd.f32 0.0, %v865
      %v867 = vpop.f32.mrf.mxu0
      %868 = vmatprep.mubr.bf16.mxu0 %v687
      %869 = vmatmul.mubr.bf16.gmra.mxu0 %v504
      %v870 = vpop.f32.mrf.mxu0
      %v871 = vadd.f32 0.0, %v870
      %v872 = vpop.f32.mrf.mxu0
      %v873 = vpop.f32.mrf.mxu0
      %v874 = vadd.f32 0.0, %v873
      %v875 = vpop.f32.mrf.mxu0
      %876 = vmatprep.mubr.bf16.mxu0 %v690
      %877 = vmatmul.mubr.bf16.gmra.mxu0 %v506
      %v878 = vpop.f32.mrf.mxu0
      %v879 = vadd.f32 0.0, %v878
      %v880 = vpop.f32.mrf.mxu0
      %v881 = vpop.f32.mrf.mxu0
      %v882 = vadd.f32 0.0, %v881
      %v883 = vpop.f32.mrf.mxu0
      %884 = vmatprep.mubr.bf16.mxu0 %v693
      %885 = vmatmul.mubr.bf16.gmra.mxu0 %v508
      %v886 = vpop.f32.mrf.mxu0
      %v887 = vadd.f32 0.0, %v886
      %v888 = vpop.f32.mrf.mxu0
      %v889 = vpop.f32.mrf.mxu0
      %v890 = vadd.f32 0.0, %v889
      %v891 = vpop.f32.mrf.mxu0
      %892 = vmatprep.mubr.bf16.mxu0 %v696
      %893 = vmatmul.mubr.bf16.gmra.mxu0 %v510
      %v894 = vpop.f32.mrf.mxu0
      %v895 = vadd.f32 0.0, %v894
      %v896 = vpop.f32.mrf.mxu0
      %v897 = vpop.f32.mrf.mxu0
      %v898 = vadd.f32 0.0, %v897
      %v899 = vpop.f32.mrf.mxu0
      %900 = vmatprep.mubr.bf16.mxu0 %v699
      %901 = vmatmul.mubr.bf16.gmra.mxu0 %v512
      %v902 = vpop.f32.mrf.mxu0
      %v903 = vadd.f32 0.0, %v902
      %v904 = vpop.f32.mrf.mxu0
      %v905 = vpop.f32.mrf.mxu0
      %v906 = vadd.f32 0.0, %v905
      %v907 = vpop.f32.mrf.mxu0
      %908 = vmatprep.mubr.bf16.mxu0 %v702
      %909 = vmatmul.mubr.bf16.gmra.mxu0 %v514
      %v910 = vpop.f32.mrf.mxu0
      %v911 = vadd.f32 0.0, %v910
      %v912 = vpop.f32.mrf.mxu0
      %v913 = vpop.f32.mrf.mxu0
      %v914 = vadd.f32 0.0, %v913
      %v915 = vpop.f32.mrf.mxu0
      %916 = vmatprep.mubr.bf16.mxu0 %v705
      %917 = vmatmul.mubr.bf16.gmra.mxu0 %v516
      %v918 = vpop.f32.mrf.mxu0
      %v919 = vadd.f32 0.0, %v918
      %v920 = vpop.f32.mrf.mxu0
      %v921 = vpop.f32.mrf.mxu0
      %v922 = vadd.f32 0.0, %v921
      %v923 = vpop.f32.mrf.mxu0
      %924 = vmatprep.mubr.bf16.mxu0 %v708
      %925 = vmatmul.mubr.bf16.gmra.mxu0 %v518
      %v926 = vpop.f32.mrf.mxu0
      %v927 = vadd.f32 0.0, %v926
      %v928 = vpop.f32.mrf.mxu0
      %v929 = vpop.f32.mrf.mxu0
      %v930 = vadd.f32 0.0, %v929
      %v931 = vpop.f32.mrf.mxu0
      %932 = vmatprep.mubr.bf16.mxu0 %v711
      %933 = vmatmul.mubr.bf16.gmra.mxu0 %v520
      %v934 = vpop.f32.mrf.mxu0
      %v935 = vadd.f32 0.0, %v934
      %v936 = vpop.f32.mrf.mxu0
      %v937 = vpop.f32.mrf.mxu0
      %v938 = vadd.f32 0.0, %v937
      %v939 = vpop.f32.mrf.mxu0
      %940 = vmatprep.mubr.bf16.mxu0 %v714
      %941 = vmatmul.mubr.bf16.gmra.mxu0 %v522
      %v942 = vpop.f32.mrf.mxu0
      %v943 = vadd.f32 0.0, %v942
      %v944 = vpop.f32.mrf.mxu0
      %v945 = vpop.f32.mrf.mxu0
      %v946 = vadd.f32 0.0, %v945
      %v947 = vpop.f32.mrf.mxu0
      %948 = vmatprep.mubr.bf16.mxu0 %v717
      %949 = vmatmul.mubr.bf16.gmra.mxu0 %v524
      %v950 = vpop.f32.mrf.mxu0
      %v951 = vadd.f32 0.0, %v950
      %v952 = vpop.f32.mrf.mxu0
      %v953 = vpop.f32.mrf.mxu0
      %v954 = vadd.f32 0.0, %v953
      %v955 = vpop.f32.mrf.mxu0
      %956 = vmatprep.mubr.bf16.mxu0 %v720
      %957 = vmatmul.mubr.bf16.gmra.mxu0 %v526
      %v958 = vpop.f32.mrf.mxu0
      %v959 = vadd.f32 0.0, %v958
      %v960 = vpop.f32.mrf.mxu0
      %v961 = vpop.f32.mrf.mxu0
      %v962 = vadd.f32 0.0, %v961
      %v963 = vpop.f32.mrf.mxu0
      %964 = vmatprep.mubr.bf16.mxu0 %v723
      %965 = vmatmul.mubr.bf16.gmra.mxu0 %v528
      %v966 = vpop.f32.mrf.mxu0
      %v967 = vadd.f32 0.0, %v966
      %v968 = vpop.f32.mrf.mxu0
      %v969 = vpop.f32.mrf.mxu0
      %v970 = vadd.f32 0.0, %v969
      %v971 = vpop.f32.mrf.mxu0
      %972 = vmatprep.mubr.bf16.mxu0 %v726
      %973 = vmatmul.mubr.bf16.gmra.mxu0 %v530
      %v974 = vpop.f32.mrf.mxu0
      %v975 = vadd.f32 0.0, %v974
      %v976 = vpop.f32.mrf.mxu0
      %v977 = vpop.f32.mrf.mxu0
      %v978 = vadd.f32 0.0, %v977
      %v979 = vpop.f32.mrf.mxu0
      %980 = vmatprep.mubr.bf16.mxu0 %v729
      %981 = vmatmul.mubr.bf16.gmra.mxu0 %v532
      %v982 = vpop.f32.mrf.mxu0
      %v983 = vadd.f32 0.0, %v982
      %v984 = vpop.f32.mrf.mxu0
      %v985 = vpop.f32.mrf.mxu0
      %v986 = vadd.f32 0.0, %v985
      %v987 = vpop.f32.mrf.mxu0
      %988 = vmatprep.mubr.bf16.mxu0 %v732
      %989 = vmatmul.mubr.bf16.gmra.mxu0 %v534
      %v990 = vpop.f32.mrf.mxu0
      %v991 = vadd.f32 0.0, %v990
      %v992 = vpop.f32.mrf.mxu0
      %v993 = vpop.f32.mrf.mxu0
      %v994 = vadd.f32 0.0, %v993
      %v995 = vpop.f32.mrf.mxu0
      %996 = vmatprep.mubr.bf16.mxu0 %v735
      %997 = vmatmul.mubr.bf16.gmra.mxu0 %v536
      %v998 = vpop.f32.mrf.mxu0
      %v999 = vadd.f32 0.0, %v998
      %v1000 = vpop.f32.mrf.mxu0
      %v1001 = vpop.f32.mrf.mxu0
      %v1002 = vadd.f32 0.0, %v1001
      %v1003 = vpop.f32.mrf.mxu0
      %1004 = vmatprep.mubr.bf16.mxu0 %v738
      %1005 = vmatmul.mubr.bf16.gmra.mxu0 %v538
      %v1006 = vpop.f32.mrf.mxu0
      %v1007 = vadd.f32 0.0, %v1006
      %v1008 = vpop.f32.mrf.mxu0
      %v1009 = vpop.f32.mrf.mxu0
      %v1010 = vadd.f32 0.0, %v1009
      %v1011 = vpop.f32.mrf.mxu0
      %1012 = vmatprep.mubr.bf16.mxu0 %v741
      %1013 = vmatmul.mubr.bf16.gmra.mxu0 %v540
      %v1014 = vpop.f32.mrf.mxu0
      %v1015 = vadd.f32 0.0, %v1014
      %v1016 = vpop.f32.mrf.mxu0
      %v1017 = vpop.f32.mrf.mxu0
      %v1018 = vadd.f32 0.0, %v1017
      %v1019 = vpop.f32.mrf.mxu0
      %1020 = vmatprep.mubr.bf16.mxu0 %v744
      %1021 = vmatmul.mubr.bf16.gmra.mxu0 %v542
      %v1022 = vpop.f32.mrf.mxu0
      %v1023 = vadd.f32 0.0, %v1022
      %v1024 = vpop.f32.mrf.mxu0
      %v1025 = vpop.f32.mrf.mxu0
      %v1026 = vadd.f32 0.0, %v1025
      %v1027 = vpop.f32.mrf.mxu0
      %1028 = vmatprep.mubr.bf16.mxu0 %v747
      %1029 = vmatmul.mubr.bf16.gmra.mxu0 %v544
      %v1030 = vpop.f32.mrf.mxu0
      %v1031 = vadd.f32 0.0, %v1030
      %v1032 = vpop.f32.mrf.mxu0
      %v1033 = vpop.f32.mrf.mxu0
      %v1034 = vadd.f32 0.0, %v1033
      %v1035 = vpop.f32.mrf.mxu0
      %1036 = vmatprep.mubr.bf16.mxu0 %v750
      %1037 = vmatmul.mubr.bf16.gmra.mxu0 %v546
      %v1038 = vpop.f32.mrf.mxu0
      %v1039 = vadd.f32 0.0, %v1038
      %v1040 = vpop.f32.mrf.mxu0
      %v1041 = vpop.f32.mrf.mxu0
      %v1042 = vadd.f32 0.0, %v1041
      %v1043 = vpop.f32.mrf.mxu0
      %1044 = vdwg.mxu0
      %vm1045 = vcmask 7168
      %1046 = vst.msk [vmem:[#allocation2] sm:$0xff] %vm1045, %v791
      %1047 = vst.msk [vmem:[#allocation2 + $0x8] sm:$0xff] %vm1045, %v794
      %1048 = vst.msk [vmem:[#allocation2 + $0x10] sm:$0xff] %vm1045, %v799
      %1049 = vst.msk [vmem:[#allocation2 + $0x18] sm:$0xff] %vm1045, %v802
      %1050 = vst.msk [vmem:[#allocation2 + $0x20] sm:$0xff] %vm1045, %v807
      %1051 = vst.msk [vmem:[#allocation2 + $0x28] sm:$0xff] %vm1045, %v810
      %1052 = vst.msk [vmem:[#allocation2 + $0x30] sm:$0xff] %vm1045, %v815
      %1053 = vst.msk [vmem:[#allocation2 + $0x38] sm:$0xff] %vm1045, %v818
      %1054 = vst.msk [vmem:[#allocation2 + $0x40] sm:$0xff] %vm1045, %v823
      %1055 = vst.msk [vmem:[#allocation2 + $0x48] sm:$0xff] %vm1045, %v826
      %1056 = vst.msk [vmem:[#allocation2 + $0x50] sm:$0xff] %vm1045, %v831
      %1057 = vst.msk [vmem:[#allocation2 + $0x58] sm:$0xff] %vm1045, %v834
      %1058 = vst.msk [vmem:[#allocation2 + $0x60] sm:$0xff] %vm1045, %v839
      %1059 = vst.msk [vmem:[#allocation2 + $0x68] sm:$0xff] %vm1045, %v842
      %1060 = vst.msk [vmem:[#allocation2 + $0x70] sm:$0xff] %vm1045, %v847
      %1061 = vst.msk [vmem:[#allocation2 + $0x78] sm:$0xff] %vm1045, %v850
      %1062 = vst.msk [vmem:[#allocation2 + $0x80] sm:$0xff] %vm1045, %v855
      %1063 = vst.msk [vmem:[#allocation2 + $0x88] sm:$0xff] %vm1045, %v858
      %1064 = vst.msk [vmem:[#allocation2 + $0x90] sm:$0xff] %vm1045, %v863
      %1065 = vst.msk [vmem:[#allocation2 + $0x98] sm:$0xff] %vm1045, %v866
      %1066 = vst.msk [vmem:[#allocation2 + $0xa0] sm:$0xff] %vm1045, %v871
      %1067 = vst.msk [vmem:[#allocation2 + $0xa8] sm:$0xff] %vm1045, %v874
      %1068 = vst.msk [vmem:[#allocation2 + $0xb0] sm:$0xff] %vm1045, %v879
      %1069 = vst.msk [vmem:[#allocation2 + $0xb8] sm:$0xff] %vm1045, %v882
      %1070 = vst.msk [vmem:[#allocation2 + $0xc0] sm:$0xff] %vm1045, %v887
      %1071 = vst.msk [vmem:[#allocation2 + $0xc8] sm:$0xff] %vm1045, %v890
      %1072 = vst.msk [vmem:[#allocation2 + $0xd0] sm:$0xff] %vm1045, %v895
      %1073 = vst.msk [vmem:[#allocation2 + $0xd8] sm:$0xff] %vm1045, %v898
      %1074 = vst.msk [vmem:[#allocation2 + $0xe0] sm:$0xff] %vm1045, %v903
      %1075 = vst.msk [vmem:[#allocation2 + $0xe8] sm:$0xff] %vm1045, %v906
      %1076 = vst.msk [vmem:[#allocation2 + $0xf0] sm:$0xff] %vm1045, %v911
      %1077 = vst.msk [vmem:[#allocation2 + $0xf8] sm:$0xff] %vm1045, %v914
      %1078 = vst.msk [vmem:[#allocation2 + $0x100] sm:$0xff] %vm1045, %v919
      %1079 = vst.msk [vmem:[#allocation2 + $0x108] sm:$0xff] %vm1045, %v922
      %1080 = vst.msk [vmem:[#allocation2 + $0x110] sm:$0xff] %vm1045, %v927
      %1081 = vst.msk [vmem:[#allocation2 + $0x118] sm:$0xff] %vm1045, %v930
      %1082 = vst.msk [vmem:[#allocation2 + $0x120] sm:$0xff] %vm1045, %v935
      %1083 = vst.msk [vmem:[#allocation2 + $0x128] sm:$0xff] %vm1045, %v938
      %1084 = vst.msk [vmem:[#allocation2 + $0x130] sm:$0xff] %vm1045, %v943
      %1085 = vst.msk [vmem:[#allocation2 + $0x138] sm:$0xff] %vm1045, %v946
      %1086 = vst.msk [vmem:[#allocation2 + $0x140] sm:$0xff] %vm1045, %v951
      %1087 = vst.msk [vmem:[#allocation2 + $0x148] sm:$0xff] %vm1045, %v954
      %1088 = vst.msk [vmem:[#allocation2 + $0x150] sm:$0xff] %vm1045, %v959
      %1089 = vst.msk [vmem:[#allocation2 + $0x158] sm:$0xff] %vm1045, %v962
      %1090 = vst.msk [vmem:[#allocation2 + $0x160] sm:$0xff] %vm1045, %v967
      %1091 = vst.msk [vmem:[#allocation2 + $0x168] sm:$0xff] %vm1045, %v970
      %1092 = vst.msk [vmem:[#allocation2 + $0x170] sm:$0xff] %vm1045, %v975
      %1093 = vst.msk [vmem:[#allocation2 + $0x178] sm:$0xff] %vm1045, %v978
      %1094 = vst.msk [vmem:[#allocation2 + $0x180] sm:$0xff] %vm1045, %v983
      %1095 = vst.msk [vmem:[#allocation2 + $0x188] sm:$0xff] %vm1045, %v986
      %1096 = vst.msk [vmem:[#allocation2 + $0x190] sm:$0xff] %vm1045, %v991
      %1097 = vst.msk [vmem:[#allocation2 + $0x198] sm:$0xff] %vm1045, %v994
      %1098 = vst.msk [vmem:[#allocation2 + $0x1a0] sm:$0xff] %vm1045, %v999
      %1099 = vst.msk [vmem:[#allocation2 + $0x1a8] sm:$0xff] %vm1045, %v1002
      %1100 = vst.msk [vmem:[#allocation2 + $0x1b0] sm:$0xff] %vm1045, %v1007
      %1101 = vst.msk [vmem:[#allocation2 + $0x1b8] sm:$0xff] %vm1045, %v1010
      %1102 = vst.msk [vmem:[#allocation2 + $0x1c0] sm:$0xff] %vm1045, %v1015
      %1103 = vst.msk [vmem:[#allocation2 + $0x1c8] sm:$0xff] %vm1045, %v1018
      %1104 = vst.msk [vmem:[#allocation2 + $0x1d0] sm:$0xff] %vm1045, %v1023
      %1105 = vst.msk [vmem:[#allocation2 + $0x1d8] sm:$0xff] %vm1045, %v1026
      %1106 = vst.msk [vmem:[#allocation2 + $0x1e0] sm:$0xff] %vm1045, %v1031
      %1107 = vst.msk [vmem:[#allocation2 + $0x1e8] sm:$0xff] %vm1045, %v1034
      %1108 = vst.msk [vmem:[#allocation2 + $0x1f0] sm:$0xff] %vm1045, %v1039
      %1109 = vst.msk [vmem:[#allocation2 + $0x1f8] sm:$0xff] %vm1045, %v1042
      %v1110 = vld [vmem:[#allocation2] sm:$0xff]
      %v1111 = vld [vmem:[#allocation2 + $0x8] sm:$0xff]
      %v1112 = vld [vmem:[#allocation2 + $0x10] sm:$0xff]
      %v1113 = vld [vmem:[#allocation2 + $0x18] sm:$0xff]
      %v1114 = vld [vmem:[#allocation2 + $0x20] sm:$0xff]
      %v1115 = vld [vmem:[#allocation2 + $0x28] sm:$0xff]
      %v1116 = vld [vmem:[#allocation2 + $0x30] sm:$0xff]
      %v1117 = vld [vmem:[#allocation2 + $0x38] sm:$0xff]
      %v1118 = vld [vmem:[#allocation2 + $0x40] sm:$0xff]
      %v1119 = vld [vmem:[#allocation2 + $0x48] sm:$0xff]
      %v1120 = vld [vmem:[#allocation2 + $0x50] sm:$0xff]
      %v1121 = vld [vmem:[#allocation2 + $0x58] sm:$0xff]
      %v1122 = vld [vmem:[#allocation2 + $0x60] sm:$0xff]
      %v1123 = vld [vmem:[#allocation2 + $0x68] sm:$0xff]
      %v1124 = vld [vmem:[#allocation2 + $0x70] sm:$0xff]
      %v1125 = vld [vmem:[#allocation2 + $0x78] sm:$0xff]
      %v1126 = vld [vmem:[#allocation2 + $0x80] sm:$0xff]
      %v1127 = vld [vmem:[#allocation2 + $0x88] sm:$0xff]
      %v1128 = vld [vmem:[#allocation2 + $0x90] sm:$0xff]
      %v1129 = vld [vmem:[#allocation2 + $0x98] sm:$0xff]
      %v1130 = vld [vmem:[#allocation2 + $0xa0] sm:$0xff]
      %v1131 = vld [vmem:[#allocation2 + $0xa8] sm:$0xff]
      %v1132 = vld [vmem:[#allocation2 + $0xb0] sm:$0xff]
      %v1133 = vld [vmem:[#allocation2 + $0xb8] sm:$0xff]
      %v1134 = vld [vmem:[#allocation2 + $0xc0] sm:$0xff]
      %v1135 = vld [vmem:[#allocation2 + $0xc8] sm:$0xff]
      %v1136 = vld [vmem:[#allocation2 + $0xd0] sm:$0xff]
      %v1137 = vld [vmem:[#allocation2 + $0xd8] sm:$0xff]
      %v1138 = vld [vmem:[#allocation2 + $0xe0] sm:$0xff]
      %v1139 = vld [vmem:[#allocation2 + $0xe8] sm:$0xff]
      %v1140 = vld [vmem:[#allocation2 + $0xf0] sm:$0xff]
      %v1141 = vld [vmem:[#allocation2 + $0xf8] sm:$0xff]
      %v1142 = vld [vmem:[#allocation2 + $0x100] sm:$0xff]
      %v1143 = vld [vmem:[#allocation2 + $0x108] sm:$0xff]
      %v1144 = vld [vmem:[#allocation2 + $0x110] sm:$0xff]
      %v1145 = vld [vmem:[#allocation2 + $0x118] sm:$0xff]
      %v1146 = vld [vmem:[#allocation2 + $0x120] sm:$0xff]
      %v1147 = vld [vmem:[#allocation2 + $0x128] sm:$0xff]
      %v1148 = vld [vmem:[#allocation2 + $0x130] sm:$0xff]
      %v1149 = vld [vmem:[#allocation2 + $0x138] sm:$0xff]
      %v1150 = vld [vmem:[#allocation2 + $0x140] sm:$0xff]
      %v1151 = vld [vmem:[#allocation2 + $0x148] sm:$0xff]
      %v1152 = vld [vmem:[#allocation2 + $0x150] sm:$0xff]
      %v1153 = vld [vmem:[#allocation2 + $0x158] sm:$0xff]
      %v1154 = vld [vmem:[#allocation2 + $0x160] sm:$0xff]
      %v1155 = vld [vmem:[#allocation2 + $0x168] sm:$0xff]
      %v1156 = vld [vmem:[#allocation2 + $0x170] sm:$0xff]
      %v1157 = vld [vmem:[#allocation2 + $0x178] sm:$0xff]
      %v1158 = vld [vmem:[#allocation2 + $0x180] sm:$0xff]
      %v1159 = vld [vmem:[#allocation2 + $0x188] sm:$0xff]
      %v1160 = vld [vmem:[#allocation2 + $0x190] sm:$0xff]
      %v1161 = vld [vmem:[#allocation2 + $0x198] sm:$0xff]
      %v1162 = vld [vmem:[#allocation2 + $0x1a0] sm:$0xff]
      %v1163 = vld [vmem:[#allocation2 + $0x1a8] sm:$0xff]
      %v1164 = vld [vmem:[#allocation2 + $0x1b0] sm:$0xff]
      %v1165 = vld [vmem:[#allocation2 + $0x1b8] sm:$0xff]
      %v1166 = vld [vmem:[#allocation2 + $0x1c0] sm:$0xff]
      %v1167 = vld [vmem:[#allocation2 + $0x1c8] sm:$0xff]
      %v1168 = vld [vmem:[#allocation2 + $0x1d0] sm:$0xff]
      %v1169 = vld [vmem:[#allocation2 + $0x1d8] sm:$0xff]
      %v1170 = vld [vmem:[#allocation2 + $0x1e0] sm:$0xff]
      %v1171 = vld [vmem:[#allocation2 + $0x1e8] sm:$0xff]
      %v1172 = vld [vmem:[#allocation2 + $0x1f0] sm:$0xff]
      %v1173 = vld [vmem:[#allocation2 + $0x1f8] sm:$0xff]
      %v1174 = vld [vmem:[#allocation3] sm:$0x1]
      %v1176 = vlaneseq
      %v1177 = vshrl.u32 %v1176, 7
      %v1178 = vsub.s32 0, %v1177
      %v1179 = vrot.slane %v1174, %v1178
      %v1181 = vadd.f32 %v1110, %v1179
      %v1182 = vadd.f32 %v1111, %v1179
      %v1183 = vadd.f32 %v1112, %v1179
      %v1184 = vadd.f32 %v1113, %v1179
      %v1185 = vadd.f32 %v1114, %v1179
      %v1186 = vadd.f32 %v1115, %v1179
      %v1187 = vadd.f32 %v1116, %v1179
      %v1188 = vadd.f32 %v1117, %v1179
      %v1189 = vadd.f32 %v1118, %v1179
      %v1190 = vadd.f32 %v1119, %v1179
      %v1191 = vadd.f32 %v1120, %v1179
      %v1192 = vadd.f32 %v1121, %v1179
      %v1193 = vadd.f32 %v1122, %v1179
      %v1194 = vadd.f32 %v1123, %v1179
      %v1195 = vadd.f32 %v1124, %v1179
      %v1196 = vadd.f32 %v1125, %v1179
      %v1197 = vadd.f32 %v1126, %v1179
      %v1198 = vadd.f32 %v1127, %v1179
      %v1199 = vadd.f32 %v1128, %v1179
      %v1200 = vadd.f32 %v1129, %v1179
      %v1201 = vadd.f32 %v1130, %v1179
      %v1202 = vadd.f32 %v1131, %v1179
      %v1203 = vadd.f32 %v1132, %v1179
      %v1204 = vadd.f32 %v1133, %v1179
      %v1205 = vadd.f32 %v1134, %v1179
      %v1206 = vadd.f32 %v1135, %v1179
      %v1207 = vadd.f32 %v1136, %v1179
      %v1208 = vadd.f32 %v1137, %v1179
      %v1209 = vadd.f32 %v1138, %v1179
      %v1210 = vadd.f32 %v1139, %v1179
      %v1211 = vadd.f32 %v1140, %v1179
      %v1212 = vadd.f32 %v1141, %v1179
      %v1213 = vadd.f32 %v1142, %v1179
      %v1214 = vadd.f32 %v1143, %v1179
      %v1215 = vadd.f32 %v1144, %v1179
      %v1216 = vadd.f32 %v1145, %v1179
      %v1217 = vadd.f32 %v1146, %v1179
      %v1218 = vadd.f32 %v1147, %v1179
      %v1219 = vadd.f32 %v1148, %v1179
      %v1220 = vadd.f32 %v1149, %v1179
      %v1221 = vadd.f32 %v1150, %v1179
      %v1222 = vadd.f32 %v1151, %v1179
      %v1223 = vadd.f32 %v1152, %v1179
      %v1224 = vadd.f32 %v1153, %v1179
      %v1225 = vadd.f32 %v1154, %v1179
      %v1226 = vadd.f32 %v1155, %v1179
      %v1227 = vadd.f32 %v1156, %v1179
      %v1228 = vadd.f32 %v1157, %v1179
      %v1229 = vadd.f32 %v1158, %v1179
      %v1230 = vadd.f32 %v1159, %v1179
      %v1231 = vadd.f32 %v1160, %v1179
      %v1232 = vadd.f32 %v1161, %v1179
      %v1233 = vadd.f32 %v1162, %v1179
      %v1234 = vadd.f32 %v1163, %v1179
      %v1235 = vadd.f32 %v1164, %v1179
      %v1236 = vadd.f32 %v1165, %v1179
      %v1237 = vadd.f32 %v1166, %v1179
      %v1238 = vadd.f32 %v1167, %v1179
      %v1239 = vadd.f32 %v1168, %v1179
      %v1240 = vadd.f32 %v1169, %v1179
      %v1241 = vadd.f32 %v1170, %v1179
      %v1242 = vadd.f32 %v1171, %v1179
      %v1243 = vadd.f32 %v1172, %v1179
      %v1244 = vadd.f32 %v1173, %v1179
      %v1245 = vpack.c.bf16 %v1182, %v1181
      %v1246 = vpack.c.bf16 %v1184, %v1183
      %v1247 = vpack.c.bf16 %v1186, %v1185
      %v1248 = vpack.c.bf16 %v1188, %v1187
      %v1249 = vpack.c.bf16 %v1190, %v1189
      %v1250 = vpack.c.bf16 %v1192, %v1191
      %v1251 = vpack.c.bf16 %v1194, %v1193
      %v1252 = vpack.c.bf16 %v1196, %v1195
      %v1253 = vpack.c.bf16 %v1198, %v1197
      %v1254 = vpack.c.bf16 %v1200, %v1199
      %v1255 = vpack.c.bf16 %v1202, %v1201
      %v1256 = vpack.c.bf16 %v1204, %v1203
      %v1257 = vpack.c.bf16 %v1206, %v1205
      %v1258 = vpack.c.bf16 %v1208, %v1207
      %v1259 = vpack.c.bf16 %v1210, %v1209
      %v1260 = vpack.c.bf16 %v1212, %v1211
      %v1261 = vpack.c.bf16 %v1214, %v1213
      %v1262 = vpack.c.bf16 %v1216, %v1215
      %v1263 = vpack.c.bf16 %v1218, %v1217
      %v1264 = vpack.c.bf16 %v1220, %v1219
      %v1265 = vpack.c.bf16 %v1222, %v1221
      %v1266 = vpack.c.bf16 %v1224, %v1223
      %v1267 = vpack.c.bf16 %v1226, %v1225
      %v1268 = vpack.c.bf16 %v1228, %v1227
      %v1269 = vpack.c.bf16 %v1230, %v1229
      %v1270 = vpack.c.bf16 %v1232, %v1231
      %v1271 = vpack.c.bf16 %v1234, %v1233
      %v1272 = vpack.c.bf16 %v1236, %v1235
      %v1273 = vpack.c.bf16 %v1238, %v1237
      %v1274 = vpack.c.bf16 %v1240, %v1239
      %v1275 = vpack.c.bf16 %v1242, %v1241
      %v1276 = vpack.c.bf16 %v1244, %v1243
      %v1309 = vunpack.c.l.b16 %v1245
      %v1310 = vunpack.c.h.b16 %v1245
      %v1311 = vunpack.c.l.b16 %v1246
      %v1312 = vunpack.c.h.b16 %v1246
      %v1313 = vunpack.c.l.b16 %v1247
      %v1314 = vunpack.c.h.b16 %v1247
      %v1315 = vunpack.c.l.b16 %v1248
      %v1316 = vunpack.c.h.b16 %v1248
      %v1317 = vunpack.c.l.b16 %v1249
      %v1318 = vunpack.c.h.b16 %v1249
      %v1319 = vunpack.c.l.b16 %v1250
      %v1320 = vunpack.c.h.b16 %v1250
      %v1321 = vunpack.c.l.b16 %v1251
      %v1322 = vunpack.c.h.b16 %v1251
      %v1323 = vunpack.c.l.b16 %v1252
      %v1324 = vunpack.c.h.b16 %v1252
      %v1325 = vunpack.c.l.b16 %v1253
      %v1326 = vunpack.c.h.b16 %v1253
      %v1327 = vunpack.c.l.b16 %v1254
      %v1328 = vunpack.c.h.b16 %v1254
      %v1329 = vunpack.c.l.b16 %v1255
      %v1330 = vunpack.c.h.b16 %v1255
      %v1331 = vunpack.c.l.b16 %v1256
      %v1332 = vunpack.c.h.b16 %v1256
      %v1333 = vunpack.c.l.b16 %v1257
      %v1334 = vunpack.c.h.b16 %v1257
      %v1335 = vunpack.c.l.b16 %v1258
      %v1336 = vunpack.c.h.b16 %v1258
      %v1337 = vunpack.c.l.b16 %v1259
      %v1338 = vunpack.c.h.b16 %v1259
      %v1339 = vunpack.c.l.b16 %v1260
      %v1340 = vunpack.c.h.b16 %v1260
      %v1341 = vunpack.c.l.b16 %v1261
      %v1342 = vunpack.c.h.b16 %v1261
      %v1343 = vunpack.c.l.b16 %v1262
      %v1344 = vunpack.c.h.b16 %v1262
      %v1345 = vunpack.c.l.b16 %v1263
      %v1346 = vunpack.c.h.b16 %v1263
      %v1347 = vunpack.c.l.b16 %v1264
      %v1348 = vunpack.c.h.b16 %v1264
      %v1349 = vunpack.c.l.b16 %v1265
      %v1350 = vunpack.c.h.b16 %v1265
      %v1351 = vunpack.c.l.b16 %v1266
      %v1352 = vunpack.c.h.b16 %v1266
      %v1353 = vunpack.c.l.b16 %v1267
      %v1354 = vunpack.c.h.b16 %v1267
      %v1355 = vunpack.c.l.b16 %v1268
      %v1356 = vunpack.c.h.b16 %v1268
      %v1357 = vunpack.c.l.b16 %v1269
      %v1358 = vunpack.c.h.b16 %v1269
      %v1359 = vunpack.c.l.b16 %v1270
      %v1360 = vunpack.c.h.b16 %v1270
      %v1361 = vunpack.c.l.b16 %v1271
      %v1362 = vunpack.c.h.b16 %v1271
      %v1363 = vunpack.c.l.b16 %v1272
      %v1364 = vunpack.c.h.b16 %v1272
      %v1365 = vunpack.c.l.b16 %v1273
      %v1366 = vunpack.c.h.b16 %v1273
      %v1367 = vunpack.c.l.b16 %v1274
      %v1368 = vunpack.c.h.b16 %v1274
      %v1369 = vunpack.c.l.b16 %v1275
      %v1370 = vunpack.c.h.b16 %v1275
      %v1371 = vunpack.c.l.b16 %v1276
      %v1372 = vunpack.c.h.b16 %v1276
      %v1373 = vpack.c.b16 %v1309, %v1309
      %v1374 = vpack.c.b16 %v1310, %v1310
      %v1375 = vpack.c.b16 %v1311, %v1311
      %v1376 = vpack.c.b16 %v1312, %v1312
      %v1377 = vpack.c.b16 %v1313, %v1313
      %v1378 = vpack.c.b16 %v1314, %v1314
      %v1379 = vpack.c.b16 %v1315, %v1315
      %v1380 = vpack.c.b16 %v1316, %v1316
      %v1381 = vpack.c.b16 %v1317, %v1317
      %v1382 = vpack.c.b16 %v1318, %v1318
      %v1383 = vpack.c.b16 %v1319, %v1319
      %v1384 = vpack.c.b16 %v1320, %v1320
      %v1385 = vpack.c.b16 %v1321, %v1321
      %v1386 = vpack.c.b16 %v1322, %v1322
      %v1387 = vpack.c.b16 %v1323, %v1323
      %v1388 = vpack.c.b16 %v1324, %v1324
      %v1389 = vpack.c.b16 %v1325, %v1325
      %v1390 = vpack.c.b16 %v1326, %v1326
      %v1391 = vpack.c.b16 %v1327, %v1327
      %v1392 = vpack.c.b16 %v1328, %v1328
      %v1393 = vpack.c.b16 %v1329, %v1329
      %v1394 = vpack.c.b16 %v1330, %v1330
      %v1395 = vpack.c.b16 %v1331, %v1331
      %v1396 = vpack.c.b16 %v1332, %v1332
      %v1397 = vpack.c.b16 %v1333, %v1333
      %v1398 = vpack.c.b16 %v1334, %v1334
      %v1399 = vpack.c.b16 %v1335, %v1335
      %v1400 = vpack.c.b16 %v1336, %v1336
      %v1401 = vpack.c.b16 %v1337, %v1337
      %v1402 = vpack.c.b16 %v1338, %v1338
      %v1403 = vpack.c.b16 %v1339, %v1339
      %v1404 = vpack.c.b16 %v1340, %v1340
      %v1405 = vpack.c.b16 %v1341, %v1341
      %v1406 = vpack.c.b16 %v1342, %v1342
      %v1407 = vpack.c.b16 %v1343, %v1343
      %v1408 = vpack.c.b16 %v1344, %v1344
      %v1409 = vpack.c.b16 %v1345, %v1345
      %v1410 = vpack.c.b16 %v1346, %v1346
      %v1411 = vpack.c.b16 %v1347, %v1347
      %v1412 = vpack.c.b16 %v1348, %v1348
      %v1413 = vpack.c.b16 %v1349, %v1349
      %v1414 = vpack.c.b16 %v1350, %v1350
      %v1415 = vpack.c.b16 %v1351, %v1351
      %v1416 = vpack.c.b16 %v1352, %v1352
      %v1417 = vpack.c.b16 %v1353, %v1353
      %v1418 = vpack.c.b16 %v1354, %v1354
      %v1419 = vpack.c.b16 %v1355, %v1355
      %v1420 = vpack.c.b16 %v1356, %v1356
      %v1421 = vpack.c.b16 %v1357, %v1357
      %v1422 = vpack.c.b16 %v1358, %v1358
      %v1423 = vpack.c.b16 %v1359, %v1359
      %v1424 = vpack.c.b16 %v1360, %v1360
      %v1425 = vpack.c.b16 %v1361, %v1361
      %v1426 = vpack.c.b16 %v1362, %v1362
      %v1427 = vpack.c.b16 %v1363, %v1363
      %v1428 = vpack.c.b16 %v1364, %v1364
      %v1429 = vpack.c.b16 %v1365, %v1365
      %v1430 = vpack.c.b16 %v1366, %v1366
      %v1431 = vpack.c.b16 %v1367, %v1367
      %v1432 = vpack.c.b16 %v1368, %v1368
      %v1433 = vpack.c.b16 %v1369, %v1369
      %v1434 = vpack.c.b16 %v1370, %v1370
      %v1435 = vpack.c.b16 %v1371, %v1371
      %v1436 = vpack.c.b16 %v1372, %v1372
      %vm1501 = vcmask 3072
      %1502 = vst.msk [vmem:[%s194] sm:$0xf] %vm1501, %v1373
      %1503 = vst.msk [vmem:[%s194 + $0x4] sm:$0xf] %vm1501, %v1374
      %1504 = vst.msk [vmem:[%s194 + $0x8] sm:$0xf] %vm1501, %v1375
      %1505 = vst.msk [vmem:[%s194 + $0xc] sm:$0xf] %vm1501, %v1376
      %1506 = vst.msk [vmem:[%s194 + $0x10] sm:$0xf] %vm1501, %v1377
      %1507 = vst.msk [vmem:[%s194 + $0x14] sm:$0xf] %vm1501, %v1378
      %1508 = vst.msk [vmem:[%s194 + $0x18] sm:$0xf] %vm1501, %v1379
      %1509 = vst.msk [vmem:[%s194 + $0x1c] sm:$0xf] %vm1501, %v1380
      %1510 = vst.msk [vmem:[%s194 + $0x20] sm:$0xf] %vm1501, %v1381
      %1511 = vst.msk [vmem:[%s194 + $0x24] sm:$0xf] %vm1501, %v1382
      %1512 = vst.msk [vmem:[%s194 + $0x28] sm:$0xf] %vm1501, %v1383
      %1513 = vst.msk [vmem:[%s194 + $0x2c] sm:$0xf] %vm1501, %v1384
      %1514 = vst.msk [vmem:[%s194 + $0x30] sm:$0xf] %vm1501, %v1385
      %1515 = vst.msk [vmem:[%s194 + $0x34] sm:$0xf] %vm1501, %v1386
      %1516 = vst.msk [vmem:[%s194 + $0x38] sm:$0xf] %vm1501, %v1387
      %1517 = vst.msk [vmem:[%s194 + $0x3c] sm:$0xf] %vm1501, %v1388
      %1518 = vst.msk [vmem:[%s194 + $0x40] sm:$0xf] %vm1501, %v1389
      %1519 = vst.msk [vmem:[%s194 + $0x44] sm:$0xf] %vm1501, %v1390
      %1520 = vst.msk [vmem:[%s194 + $0x48] sm:$0xf] %vm1501, %v1391
      %1521 = vst.msk [vmem:[%s194 + $0x4c] sm:$0xf] %vm1501, %v1392
      %1522 = vst.msk [vmem:[%s194 + $0x50] sm:$0xf] %vm1501, %v1393
      %1523 = vst.msk [vmem:[%s194 + $0x54] sm:$0xf] %vm1501, %v1394
      %1524 = vst.msk [vmem:[%s194 + $0x58] sm:$0xf] %vm1501, %v1395
      %1525 = vst.msk [vmem:[%s194 + $0x5c] sm:$0xf] %vm1501, %v1396
      %1526 = vst.msk [vmem:[%s194 + $0x60] sm:$0xf] %vm1501, %v1397
      %1527 = vst.msk [vmem:[%s194 + $0x64] sm:$0xf] %vm1501, %v1398
      %1528 = vst.msk [vmem:[%s194 + $0x68] sm:$0xf] %vm1501, %v1399
      %1529 = vst.msk [vmem:[%s194 + $0x6c] sm:$0xf] %vm1501, %v1400
      %1530 = vst.msk [vmem:[%s194 + $0x70] sm:$0xf] %vm1501, %v1401
      %1531 = vst.msk [vmem:[%s194 + $0x74] sm:$0xf] %vm1501, %v1402
      %1532 = vst.msk [vmem:[%s194 + $0x78] sm:$0xf] %vm1501, %v1403
      %1533 = vst.msk [vmem:[%s194 + $0x7c] sm:$0xf] %vm1501, %v1404
      %1534 = vst.msk [vmem:[%s194 + $0x80] sm:$0xf] %vm1501, %v1405
      %1535 = vst.msk [vmem:[%s194 + $0x84] sm:$0xf] %vm1501, %v1406
      %1536 = vst.msk [vmem:[%s194 + $0x88] sm:$0xf] %vm1501, %v1407
      %1537 = vst.msk [vmem:[%s194 + $0x8c] sm:$0xf] %vm1501, %v1408
      %1538 = vst.msk [vmem:[%s194 + $0x90] sm:$0xf] %vm1501, %v1409
      %1539 = vst.msk [vmem:[%s194 + $0x94] sm:$0xf] %vm1501, %v1410
      %1540 = vst.msk [vmem:[%s194 + $0x98] sm:$0xf] %vm1501, %v1411
      %1541 = vst.msk [vmem:[%s194 + $0x9c] sm:$0xf] %vm1501, %v1412
      %1542 = vst.msk [vmem:[%s194 + $0xa0] sm:$0xf] %vm1501, %v1413
      %1543 = vst.msk [vmem:[%s194 + $0xa4] sm:$0xf] %vm1501, %v1414
      %1544 = vst.msk [vmem:[%s194 + $0xa8] sm:$0xf] %vm1501, %v1415
      %1545 = vst.msk [vmem:[%s194 + $0xac] sm:$0xf] %vm1501, %v1416
      %1546 = vst.msk [vmem:[%s194 + $0xb0] sm:$0xf] %vm1501, %v1417
      %1547 = vst.msk [vmem:[%s194 + $0xb4] sm:$0xf] %vm1501, %v1418
      %1548 = vst.msk [vmem:[%s194 + $0xb8] sm:$0xf] %vm1501, %v1419
      %1549 = vst.msk [vmem:[%s194 + $0xbc] sm:$0xf] %vm1501, %v1420
      %1550 = vst.msk [vmem:[%s194 + $0xc0] sm:$0xf] %vm1501, %v1421
      %1551 = vst.msk [vmem:[%s194 + $0xc4] sm:$0xf] %vm1501, %v1422
      %1552 = vst.msk [vmem:[%s194 + $0xc8] sm:$0xf] %vm1501, %v1423
      %1553 = vst.msk [vmem:[%s194 + $0xcc] sm:$0xf] %vm1501, %v1424
      %1554 = vst.msk [vmem:[%s194 + $0xd0] sm:$0xf] %vm1501, %v1425
      %1555 = vst.msk [vmem:[%s194 + $0xd4] sm:$0xf] %vm1501, %v1426
      %1556 = vst.msk [vmem:[%s194 + $0xd8] sm:$0xf] %vm1501, %v1427
      %1557 = vst.msk [vmem:[%s194 + $0xdc] sm:$0xf] %vm1501, %v1428
      %1558 = vst.msk [vmem:[%s194 + $0xe0] sm:$0xf] %vm1501, %v1429
      %1559 = vst.msk [vmem:[%s194 + $0xe4] sm:$0xf] %vm1501, %v1430
      %1560 = vst.msk [vmem:[%s194 + $0xe8] sm:$0xf] %vm1501, %v1431
      %1561 = vst.msk [vmem:[%s194 + $0xec] sm:$0xf] %vm1501, %v1432
      %1562 = vst.msk [vmem:[%s194 + $0xf0] sm:$0xf] %vm1501, %v1433
      %1563 = vst.msk [vmem:[%s194 + $0xf4] sm:$0xf] %vm1501, %v1434
      %1564 = vst.msk [vmem:[%s194 + $0xf8] sm:$0xf] %vm1501, %v1435
      %1565 = vst.msk [vmem:[%s194 + $0xfc] sm:$0xf] %vm1501, %v1436
      %s1566 = smul.u32 64, %s21
      %p1567 = scmp.lt.s32.totalorder %s20, 1
      %s1568 = scalar_select %p1567, %s20, 1
      %p1569 = scmp.lt.s32.totalorder %s1566, 127
      %s1570 = scalar_select %p1569, %s1566, 127
      %s1571 = smul.addr %s1568, 128
      %s1572 = sadd.s32 %s1570, %s1571
      %s1573 = smul.addr %s1572, 4
      %s1574 = scalar_lea.vmem %s3, %s1573
      // Predicated region
      $region33: #{dense_conv1d.1} parent=31 // pred_check
        %p1575 = pneg %p116
      $region34: #{dense_conv1d.1} parent=31 // pred_check_branch
        %1577 = sbr.rel (%p1575) target = $region36
      $region35: #{dense_conv1d.1} parent=31 // pred_region
        %s1578 = smul.u32 64, %s21
      $region36: #{dense_conv1d.1} parent=31 // pred_fallthru
        _
    $region32: #{dense_conv1d.1} parent=5 // pred_fallthru
      _
    %p1579 = scmp.le.s32.totalorder 2, %s11
    // Predicated region
    $region37: #{dense_conv1d.1} parent=5 // pred_check
      %p1580 = pneg %p1579
    $region38: #{dense_conv1d.1} parent=5 // pred_check_branch
      %1582 = sbr.rel (%p1580) target = $region40
    $region39: #{dense_conv1d.1} parent=5 // pred_region
      %s1583 = ssub.s32 %s11, 2
      // Predicated region
      $region41: #{dense_conv1d.1} parent=39 // pred_check
        %p1584 = pneg %p122
      $region42: #{dense_conv1d.1} parent=39 // pred_check_branch
        %1586 = sbr.rel (%p1584) target = $region44
      $region43: #{dense_conv1d.1} parent=39 // pred_region
        %s1587 = smul.u32 64, %s23
        %p1588 = scmp.lt.s32.totalorder %s22, 1
        %s1589 = scalar_select %p1588, %s22, 1
        %p1590 = scmp.lt.s32.totalorder %s1587, 127
        %s1591 = scalar_select %p1590, %s1587, 127
        %s1592 = smul.addr %s1589, 128
        %s1593 = sadd.s32 %s1591, %s1592
        %s1594 = smul.addr %s1593, 4
        %s1595 = scalar_lea.vmem %s3, %s1594
      $region44: #{dense_conv1d.1} parent=39 // pred_fallthru
        _
    $region40: #{dense_conv1d.1} parent=5 // pred_fallthru
      _
  $region6: #{dense_conv1d.1} parent=0 // loop_footer
    %s15 = sadd.s32 1, %s11
  $region7: #{dense_conv1d.1} parent=0 // loop_footer_branch
    %10 = sbr.rel target = $region3
  $region8: #{dense_conv1d.1} parent=0 // loop_exit
    _

</llo_original>
